<compile_context>
chip_gen: v5e
topology: v5e:2x2
jax: 0.10.0
libtpu: 0.0.40
codegen_flags: <defaults>
</compile_context>

<pallas_src>
import jax
import jax.numpy as jnp
from jax.experimental import pallas as pl
from jax.experimental.pallas import tpu as pltpu

NEG_SLOPE = 0.2     # PyG GATConv default negative_slope
NUM_LAYERS = 6


# ----------------------------- fused Pallas kernel ------------------------------

def _gatnet_fused_kernel(x_ref, adj_ref, pool_ref,
                         w_ref, adst_ref, asrc_ref, b_ref,
                         wd_ref, bd_ref, wm_ref, bm_ref, o_ref):
    """Whole GATNet_mse forward in one kernel (everything VMEM-resident).

      x_ref    (N, F)      node features, zero-padded to F = max feature dim
      adj_ref  (N, N)      adj[i, j] = 1 iff edge j -> i (self-loops included)
      pool_ref (G, N)      row-normalized mean-pool matrix
      w_ref    (L, F, F)   per-layer GATConv weights (zero-padded)
      adst_ref (L, 1, F)   att_dst rows (zero-padded)
      asrc_ref (L, F, 1)   att_src columns (zero-padded)
      b_ref    (L, 1, F)   conv biases (zero-padded)
      wd_ref   (F, H) / bd_ref (1, H) / wm_ref (H, 2) / bm_ref (1, 2)
      o_ref    (G, 2)
    """
    # Additive neighbourhood mask, built once and reused by all 6 layers.
    adj_bias = jnp.where(adj_ref[...] > 0.0, 0.0, -1e30)

    h = x_ref[...]
    for l in range(NUM_LAYERS):                       # unrolled at trace time
        # h = X @ W   (MXU, fp32 accumulation)
        h = jnp.dot(h, w_ref[l], preferred_element_type=jnp.float32)       # (N, F)

        # Per-node attention scores: VPU multiply + XLU reduce (no 1-wide MXU).
        s_dst = jnp.sum(h * adst_ref[l], axis=-1, keepdims=True)           # (N, 1)
        s_src_t = jnp.sum(h.T * asrc_ref[l], axis=0, keepdims=True)        # (1, N)

        # e[i, j] = LeakyReLU(s_dst[i] + s_src[j]) + additive mask
        e = s_dst + s_src_t                                                # (N, N)
        e = jnp.where(e > 0.0, e, NEG_SLOPE * e)
        e = e + adj_bias
        e = e - jnp.max(e, axis=-1, keepdims=True)
        p = jnp.exp(e)                                                     # masked -> 0

        # Self-loops guarantee >=1 unmasked neighbour per row; max() is cheap
        # insurance against an all-masked row.
        denom = jnp.maximum(jnp.sum(p, axis=-1, keepdims=True), 1e-20)
        inv_denom = pl.reciprocal(denom, approx=True)                      # EUP slot

        # alpha @ h folded as (p @ h) * (1/denom), then bias + forward's ReLU.
        out = jnp.dot(p, h, preferred_element_type=jnp.float32) * inv_denom + b_ref[l]
        h = jnp.maximum(out, 0.0)

    # global_mean_pool + dense(+ReLU) + fc_mu
    pooled = jnp.dot(pool_ref[...], h, preferred_element_type=jnp.float32)          # (G, F)
    d = jnp.dot(pooled, wd_ref[...], preferred_element_type=jnp.float32) + bd_ref[...]
    d = jnp.maximum(d, 0.0)
    o_ref[...] = jnp.dot(d, wm_ref[...], preferred_element_type=jnp.float32) + bm_ref[...]


# ------------------------------ JAX wrapper --------------------------------

@jax.jit
def gatnet_mse_forward(x, adj, pool, conv_params, dense_params, mu_params):
    """Full forward pass in ONE pallas_call (everything resident in VMEM)."""
    assert len(conv_params) == NUM_LAYERS
    n, f_in0 = x.shape
    g = pool.shape[0]
    wd, bd = dense_params
    wm, bm = mu_params

    # Common padded feature width so all layer params stack into one tensor each.
    f_max = max([f_in0] + [max(w.shape) for (w, _, _, _) in conv_params])

    w_s, adst_s, asrc_s, b_s = [], [], [], []
    for (w, a_src, a_dst, b) in conv_params:
        fi, fo = w.shape
        w_s.append(jnp.zeros((f_max, f_max), jnp.float32).at[:fi, :fo].set(w))
        adst_s.append(jnp.zeros((1, f_max), jnp.float32).at[0, :fo].set(a_dst.reshape(-1)))
        asrc_s.append(jnp.zeros((f_max, 1), jnp.float32).at[:fo, 0].set(a_src.reshape(-1)))
        b_s.append(jnp.zeros((1, f_max), jnp.float32).at[0, :fo].set(b.reshape(-1)))
    w_stack = jnp.stack(w_s)          # (L, F, F)
    adst_stack = jnp.stack(adst_s)    # (L, 1, F)
    asrc_stack = jnp.stack(asrc_s)    # (L, F, 1)
    b_stack = jnp.stack(b_s)          # (L, 1, F)

    x_pad = jnp.zeros((n, f_max), jnp.float32).at[:, :f_in0].set(x.astype(jnp.float32))
    # Dense weight rows padded to f_max (padded rows see only zero activations).
    wd_pad = jnp.zeros((f_max, wd.shape[1]), jnp.float32).at[:wd.shape[0], :].set(wd)

    inputs = [
        x_pad,
        adj.astype(jnp.float32),
        pool.astype(jnp.float32),
        w_stack, adst_stack, asrc_stack, b_stack,
        wd_pad,
        bd.reshape(1, -1).astype(jnp.float32),
        wm.astype(jnp.float32),
        bm.reshape(1, -1).astype(jnp.float32),
    ]

    h_out = wd.shape[1]
    o_dim = wm.shape[1]
    flops = NUM_LAYERS * (2 * n * f_max * f_max          # X @ W
                          + 4 * n * f_max                # attention scores
                          + 8 * n * n                    # mask / leaky / softmax VPU
                          + 2 * n * n * f_max)           # p @ h
    flops += 2 * g * n * f_max + 2 * g * f_max * h_out + 2 * g * h_out * o_dim
    cost = pl.CostEstimate(
        flops=int(flops),
        transcendentals=int(NUM_LAYERS * (n * n + n)),    # exp + approx reciprocal
        bytes_accessed=int(sum(int(a.size) for a in inputs) * 4 + g * o_dim * 4),
    )

    # Tiny problem: no grid, whole arrays live in VMEM.
    # TODO(synk): for large N / many graphs, add a grid over destination-row
    # tiles (and graphs, "parallel" for v7x's 2 TCs) with per-tile BlockSpecs.
    return pl.pallas_call(
        _gatnet_fused_kernel,
        out_shape=jax.ShapeDtypeStruct((g, o_dim), jnp.float32),
        in_specs=[pl.BlockSpec(memory_space=pltpu.MemorySpace.VMEM) for _ in inputs],
        out_specs=pl.BlockSpec(memory_space=pltpu.MemorySpace.VMEM),
        cost_estimate=cost,
    )(*inputs)


# ---------------------------------- main -------------------------------------

if __name__ == "__main__":
    key = jax.random.PRNGKey(0)

    num_node_features = 4
    hidden_dims = [8, 8, 8, 8, 8, 8]     # hp['hidden_dim1..6']
    num_layers = [1, 1, 1, 1, 1, 1]      # hp['num_layers1..6']
    heads = 1                            # hp.get('num_heads', [1]*6)
    # use_batch_norm = False -> no BatchNorm layers instantiated.

    nodes_per_graph = 8
    num_graphs = 2
    n_nodes = nodes_per_graph * num_graphs

    # node features
    key, k = jax.random.split(key)
    x = jax.random.normal(k, (n_nodes, num_node_features), dtype=jnp.float32)

    # synthetic block-diagonal random adjacency (edge j -> i) + self loops
    key, k = jax.random.split(key)
    rand = jax.random.uniform(k, (n_nodes, n_nodes))
    block = jnp.zeros((n_nodes, n_nodes), dtype=jnp.float32)
    for gi in range(num_graphs):
        s = gi * nodes_per_graph
        block = block.at[s:s + nodes_per_graph, s:s + nodes_per_graph].set(1.0)
    adj = jnp.where((rand < 0.3) & (block > 0), 1.0, 0.0)
    adj = jnp.maximum(adj, jnp.eye(n_nodes, dtype=jnp.float32))  # add_self_loops

    # data.batch -> mean-pooling matrix (G, N)
    batch = jnp.repeat(jnp.arange(num_graphs), nodes_per_graph)
    pool = (batch[None, :] == jnp.arange(num_graphs)[:, None]).astype(jnp.float32)
    pool = pool / jnp.sum(pool, axis=1, keepdims=True)

    # deterministic parameter init (matching PyG GATConv / nn.Linear shapes)
    conv_params = []
    f_in = num_node_features
    for i in range(6):
        for j in range(num_layers[i]):
            f_out = hidden_dims[i] // heads
            key, k1, k2, k3 = jax.random.split(key, 4)
            w = jax.random.normal(k1, (f_in, f_out), jnp.float32) / jnp.sqrt(f_in)
            a_src = jax.random.normal(k2, (f_out,), jnp.float32) / jnp.sqrt(f_out)
            a_dst = jax.random.normal(k3, (f_out,), jnp.float32) / jnp.sqrt(f_out)
            b = jnp.zeros((f_out,), jnp.float32)
            conv_params.append((w, a_src, a_dst, b))
            f_in = f_out * heads

    hidden = hidden_dims[-1] * heads
    key, k1, k2 = jax.random.split(key, 3)
    wd = jax.random.normal(k1, (hidden, hidden_dims[-1]), jnp.float32) / jnp.sqrt(hidden)
    bd = jnp.zeros((hidden_dims[-1],), jnp.float32)
    wm = jax.random.normal(k2, (hidden_dims[-1], 2), jnp.float32) / jnp.sqrt(hidden_dims[-1])
    bm = jnp.zeros((2,), jnp.float32)

    mu = gatnet_mse_forward(x, adj, pool, conv_params, (wd, bd), (wm, bm))
    mu = jax.block_until_ready(mu)
    assert mu.shape == (num_graphs, 2) and mu.dtype == jnp.float32
    assert bool(jnp.all(jnp.isfinite(mu)))
    print("KERNEL_OK")
</pallas_src>

<mosaic_0001>
module attributes {stable_mosaic.version = 11 : i64} {
  func.func @_gatnet_fused_kernel(%arg0: memref<16x8xf32, #tpu.memory_space<vmem>>, %arg1: memref<16x16xf32, #tpu.memory_space<vmem>>, %arg2: memref<2x16xf32, #tpu.memory_space<vmem>>, %arg3: memref<6x8x8xf32, #tpu.memory_space<vmem>>, %arg4: memref<6x1x8xf32, #tpu.memory_space<vmem>>, %arg5: memref<6x8x1xf32, #tpu.memory_space<vmem>>, %arg6: memref<6x1x8xf32, #tpu.memory_space<vmem>>, %arg7: memref<8x8xf32, #tpu.memory_space<vmem>>, %arg8: memref<1x8xf32, #tpu.memory_space<vmem>>, %arg9: memref<8x2xf32, #tpu.memory_space<vmem>>, %arg10: memref<1x2xf32, #tpu.memory_space<vmem>>, %arg11: memref<2x2xf32, #tpu.memory_space<vmem>>) attributes {dimension_semantics = [], scalar_prefetch = 0 : i64, scratch_operands = 0 : i64, tpu.core_type = #tpu.core_type<tc>} {
    %c0 = arith.constant 0 : index
    %c0_0 = arith.constant 0 : index
    %0 = vector.load %arg1[%c0, %c0_0] : memref<16x16xf32, #tpu.memory_space<vmem>>, vector<16x16xf32>
    %cst = arith.constant 0.000000e+00 : f32
    %1 = vector.broadcast %cst : f32 to vector<16x16xf32>
    %2 = arith.cmpf ogt, %0, %1 : vector<16x16xf32>
    %cst_1 = arith.constant 0.000000e+00 : f32
    %cst_2 = arith.constant -1.000000e+30 : f32
    %3 = vector.broadcast %cst_1 : f32 to vector<16x16xf32>
    %4 = vector.broadcast %cst_2 : f32 to vector<16x16xf32>
    %5 = arith.select %2, %3, %4 : vector<16x16xi1>, vector<16x16xf32>
    %c0_3 = arith.constant 0 : index
    %c0_4 = arith.constant 0 : index
    %6 = vector.load %arg0[%c0_3, %c0_4] : memref<16x8xf32, #tpu.memory_space<vmem>>, vector<16x8xf32>
    %c0_5 = arith.constant 0 : index
    %c0_6 = arith.constant 0 : index
    %c0_7 = arith.constant 0 : index
    %7 = vector.load %arg3[%c0_5, %c0_6, %c0_7] : memref<6x8x8xf32, #tpu.memory_space<vmem>>, vector<1x8x8xf32>
    %8 = vector.shape_cast %7 : vector<1x8x8xf32> to vector<8x8xf32>
    %cst_8 = arith.constant dense<0.000000e+00> : vector<16x8xf32>
    %9 = tpu.matmul %6, %8, %cst_8 {dimension_numbers = #tpu.dot_dimension_numbers<[1], [0], [0], [1], [0, 0, 1, 1], [], []>} : vector<16x8xf32>, vector<8x8xf32>, vector<16x8xf32> -> vector<16x8xf32>
    %c0_9 = arith.constant 0 : index
    %c0_10 = arith.constant 0 : index
    %c0_11 = arith.constant 0 : index
    %10 = vector.load %arg4[%c0_9, %c0_10, %c0_11] : memref<6x1x8xf32, #tpu.memory_space<vmem>>, vector<1x1x8xf32>
    %11 = vector.shape_cast %10 : vector<1x1x8xf32> to vector<1x8xf32>
    %12 = vector.broadcast %11 : vector<1x8xf32> to vector<16x8xf32>
    %13 = arith.mulf %9, %12 : vector<16x8xf32>
    %cst_12 = arith.constant dense<0.000000e+00> : vector<16xf32>
    %14 = vector.multi_reduction <add>, %13, %cst_12 [1] : vector<16x8xf32> to vector<16xf32>
    %15 = vector.shape_cast %14 : vector<16xf32> to vector<16x1xf32>
    %16 = tpu.transpose %9, [1, 0] : vector<16x8xf32> -> vector<8x16xf32>
    %c0_13 = arith.constant 0 : index
    %c0_14 = arith.constant 0 : index
    %c0_15 = arith.constant 0 : index
    %17 = vector.load %arg5[%c0_13, %c0_14, %c0_15] : memref<6x8x1xf32, #tpu.memory_space<vmem>>, vector<1x8x1xf32>
    %18 = vector.shape_cast %17 : vector<1x8x1xf32> to vector<8x1xf32>
    %19 = vector.broadcast %18 : vector<8x1xf32> to vector<8x16xf32>
    %20 = arith.mulf %16, %19 : vector<8x16xf32>
    %cst_16 = arith.constant dense<0.000000e+00> : vector<16xf32>
    %21 = vector.multi_reduction <add>, %20, %cst_16 [0] : vector<8x16xf32> to vector<16xf32>
    %22 = vector.shape_cast %21 : vector<16xf32> to vector<1x16xf32>
    %23 = vector.broadcast %15 : vector<16x1xf32> to vector<16x16xf32>
    %24 = vector.broadcast %22 : vector<1x16xf32> to vector<16x16xf32>
    %25 = arith.addf %23, %24 : vector<16x16xf32>
    %cst_17 = arith.constant 0.000000e+00 : f32
    %26 = vector.broadcast %cst_17 : f32 to vector<16x16xf32>
    %27 = arith.cmpf ogt, %25, %26 : vector<16x16xf32>
    %cst_18 = arith.constant 2.000000e-01 : f32
    %28 = vector.broadcast %cst_18 : f32 to vector<16x16xf32>
    %29 = arith.mulf %28, %25 : vector<16x16xf32>
    %30 = arith.select %27, %25, %29 : vector<16x16xi1>, vector<16x16xf32>
    %31 = arith.addf %30, %5 : vector<16x16xf32>
    %cst_19 = arith.constant dense<0xFF800000> : vector<16xf32>
    %32 = vector.multi_reduction <maximumf>, %31, %cst_19 [1] : vector<16x16xf32> to vector<16xf32>
    %33 = vector.shape_cast %32 : vector<16xf32> to vector<16x1xf32>
    %34 = vector.broadcast %33 : vector<16x1xf32> to vector<16x16xf32>
    %35 = arith.subf %31, %34 : vector<16x16xf32>
    %36 = math.exp %35 : vector<16x16xf32>
    %cst_20 = arith.constant dense<0.000000e+00> : vector<16xf32>
    %37 = vector.multi_reduction <add>, %36, %cst_20 [1] : vector<16x16xf32> to vector<16xf32>
    %38 = vector.shape_cast %37 : vector<16xf32> to vector<16x1xf32>
    %cst_21 = arith.constant 9.99999968E-21 : f32
    %39 = vector.broadcast %cst_21 : f32 to vector<16x1xf32>
    %40 = arith.maximumf %38, %39 : vector<16x1xf32>
    %41 = tpu.reciprocal %40 {approx = true} : vector<16x1xf32> -> vector<16x1xf32>
    %cst_22 = arith.constant dense<0.000000e+00> : vector<16x8xf32>
    %42 = tpu.matmul %36, %9, %cst_22 {dimension_numbers = #tpu.dot_dimension_numbers<[1], [0], [0], [1], [0, 0, 1, 1], [], []>} : vector<16x16xf32>, vector<16x8xf32>, vector<16x8xf32> -> vector<16x8xf32>
    %43 = vector.broadcast %41 : vector<16x1xf32> to vector<16x8xf32>
    %44 = arith.mulf %42, %43 : vector<16x8xf32>
    %c0_23 = arith.constant 0 : index
    %c0_24 = arith.constant 0 : index
    %c0_25 = arith.constant 0 : index
    %45 = vector.load %arg6[%c0_23, %c0_24, %c0_25] : memref<6x1x8xf32, #tpu.memory_space<vmem>>, vector<1x1x8xf32>
    %46 = vector.shape_cast %45 : vector<1x1x8xf32> to vector<1x8xf32>
    %47 = vector.broadcast %46 : vector<1x8xf32> to vector<16x8xf32>
    %48 = arith.addf %44, %47 : vector<16x8xf32>
    %cst_26 = arith.constant 0.000000e+00 : f32
    %49 = vector.broadcast %cst_26 : f32 to vector<16x8xf32>
    %50 = arith.maximumf %48, %49 : vector<16x8xf32>
    %c1 = arith.constant 1 : index
    %c0_27 = arith.constant 0 : index
    %c0_28 = arith.constant 0 : index
    %51 = vector.load %arg3[%c1, %c0_27, %c0_28] : memref<6x8x8xf32, #tpu.memory_space<vmem>>, vector<1x8x8xf32>
    %52 = vector.shape_cast %51 : vector<1x8x8xf32> to vector<8x8xf32>
    %cst_29 = arith.constant dense<0.000000e+00> : vector<16x8xf32>
    %53 = tpu.matmul %50, %52, %cst_29 {dimension_numbers = #tpu.dot_dimension_numbers<[1], [0], [0], [1], [0, 0, 1, 1], [], []>} : vector<16x8xf32>, vector<8x8xf32>, vector<16x8xf32> -> vector<16x8xf32>
    %c1_30 = arith.constant 1 : index
    %c0_31 = arith.constant 0 : index
    %c0_32 = arith.constant 0 : index
    %54 = vector.load %arg4[%c1_30, %c0_31, %c0_32] : memref<6x1x8xf32, #tpu.memory_space<vmem>>, vector<1x1x8xf32>
    %55 = vector.shape_cast %54 : vector<1x1x8xf32> to vector<1x8xf32>
    %56 = vector.broadcast %55 : vector<1x8xf32> to vector<16x8xf32>
    %57 = arith.mulf %53, %56 : vector<16x8xf32>
    %cst_33 = arith.constant dense<0.000000e+00> : vector<16xf32>
    %58 = vector.multi_reduction <add>, %57, %cst_33 [1] : vector<16x8xf32> to vector<16xf32>
    %59 = vector.shape_cast %58 : vector<16xf32> to vector<16x1xf32>
    %60 = tpu.transpose %53, [1, 0] : vector<16x8xf32> -> vector<8x16xf32>
    %c1_34 = arith.constant 1 : index
    %c0_35 = arith.constant 0 : index
    %c0_36 = arith.constant 0 : index
    %61 = vector.load %arg5[%c1_34, %c0_35, %c0_36] : memref<6x8x1xf32, #tpu.memory_space<vmem>>, vector<1x8x1xf32>
    %62 = vector.shape_cast %61 : vector<1x8x1xf32> to vector<8x1xf32>
    %63 = vector.broadcast %62 : vector<8x1xf32> to vector<8x16xf32>
    %64 = arith.mulf %60, %63 : vector<8x16xf32>
    %cst_37 = arith.constant dense<0.000000e+00> : vector<16xf32>
    %65 = vector.multi_reduction <add>, %64, %cst_37 [0] : vector<8x16xf32> to vector<16xf32>
    %66 = vector.shape_cast %65 : vector<16xf32> to vector<1x16xf32>
    %67 = vector.broadcast %59 : vector<16x1xf32> to vector<16x16xf32>
    %68 = vector.broadcast %66 : vector<1x16xf32> to vector<16x16xf32>
    %69 = arith.addf %67, %68 : vector<16x16xf32>
    %cst_38 = arith.constant 0.000000e+00 : f32
    %70 = vector.broadcast %cst_38 : f32 to vector<16x16xf32>
    %71 = arith.cmpf ogt, %69, %70 : vector<16x16xf32>
    %cst_39 = arith.constant 2.000000e-01 : f32
    %72 = vector.broadcast %cst_39 : f32 to vector<16x16xf32>
    %73 = arith.mulf %72, %69 : vector<16x16xf32>
    %74 = arith.select %71, %69, %73 : vector<16x16xi1>, vector<16x16xf32>
    %75 = arith.addf %74, %5 : vector<16x16xf32>
    %cst_40 = arith.constant dense<0xFF800000> : vector<16xf32>
    %76 = vector.multi_reduction <maximumf>, %75, %cst_40 [1] : vector<16x16xf32> to vector<16xf32>
    %77 = vector.shape_cast %76 : vector<16xf32> to vector<16x1xf32>
    %78 = vector.broadcast %77 : vector<16x1xf32> to vector<16x16xf32>
    %79 = arith.subf %75, %78 : vector<16x16xf32>
    %80 = math.exp %79 : vector<16x16xf32>
    %cst_41 = arith.constant dense<0.000000e+00> : vector<16xf32>
    %81 = vector.multi_reduction <add>, %80, %cst_41 [1] : vector<16x16xf32> to vector<16xf32>
    %82 = vector.shape_cast %81 : vector<16xf32> to vector<16x1xf32>
    %cst_42 = arith.constant 9.99999968E-21 : f32
    %83 = vector.broadcast %cst_42 : f32 to vector<16x1xf32>
    %84 = arith.maximumf %82, %83 : vector<16x1xf32>
    %85 = tpu.reciprocal %84 {approx = true} : vector<16x1xf32> -> vector<16x1xf32>
    %cst_43 = arith.constant dense<0.000000e+00> : vector<16x8xf32>
    %86 = tpu.matmul %80, %53, %cst_43 {dimension_numbers = #tpu.dot_dimension_numbers<[1], [0], [0], [1], [0, 0, 1, 1], [], []>} : vector<16x16xf32>, vector<16x8xf32>, vector<16x8xf32> -> vector<16x8xf32>
    %87 = vector.broadcast %85 : vector<16x1xf32> to vector<16x8xf32>
    %88 = arith.mulf %86, %87 : vector<16x8xf32>
    %c1_44 = arith.constant 1 : index
    %c0_45 = arith.constant 0 : index
    %c0_46 = arith.constant 0 : index
    %89 = vector.load %arg6[%c1_44, %c0_45, %c0_46] : memref<6x1x8xf32, #tpu.memory_space<vmem>>, vector<1x1x8xf32>
    %90 = vector.shape_cast %89 : vector<1x1x8xf32> to vector<1x8xf32>
    %91 = vector.broadcast %90 : vector<1x8xf32> to vector<16x8xf32>
    %92 = arith.addf %88, %91 : vector<16x8xf32>
    %cst_47 = arith.constant 0.000000e+00 : f32
    %93 = vector.broadcast %cst_47 : f32 to vector<16x8xf32>
    %94 = arith.maximumf %92, %93 : vector<16x8xf32>
    %c2 = arith.constant 2 : index
    %c0_48 = arith.constant 0 : index
    %c0_49 = arith.constant 0 : index
    %95 = vector.load %arg3[%c2, %c0_48, %c0_49] : memref<6x8x8xf32, #tpu.memory_space<vmem>>, vector<1x8x8xf32>
    %96 = vector.shape_cast %95 : vector<1x8x8xf32> to vector<8x8xf32>
    %cst_50 = arith.constant dense<0.000000e+00> : vector<16x8xf32>
    %97 = tpu.matmul %94, %96, %cst_50 {dimension_numbers = #tpu.dot_dimension_numbers<[1], [0], [0], [1], [0, 0, 1, 1], [], []>} : vector<16x8xf32>, vector<8x8xf32>, vector<16x8xf32> -> vector<16x8xf32>
    %c2_51 = arith.constant 2 : index
    %c0_52 = arith.constant 0 : index
    %c0_53 = arith.constant 0 : index
    %98 = vector.load %arg4[%c2_51, %c0_52, %c0_53] : memref<6x1x8xf32, #tpu.memory_space<vmem>>, vector<1x1x8xf32>
    %99 = vector.shape_cast %98 : vector<1x1x8xf32> to vector<1x8xf32>
    %100 = vector.broadcast %99 : vector<1x8xf32> to vector<16x8xf32>
    %101 = arith.mulf %97, %100 : vector<16x8xf32>
    %cst_54 = arith.constant dense<0.000000e+00> : vector<16xf32>
    %102 = vector.multi_reduction <add>, %101, %cst_54 [1] : vector<16x8xf32> to vector<16xf32>
    %103 = vector.shape_cast %102 : vector<16xf32> to vector<16x1xf32>
    %104 = tpu.transpose %97, [1, 0] : vector<16x8xf32> -> vector<8x16xf32>
    %c2_55 = arith.constant 2 : index
    %c0_56 = arith.constant 0 : index
    %c0_57 = arith.constant 0 : index
    %105 = vector.load %arg5[%c2_55, %c0_56, %c0_57] : memref<6x8x1xf32, #tpu.memory_space<vmem>>, vector<1x8x1xf32>
    %106 = vector.shape_cast %105 : vector<1x8x1xf32> to vector<8x1xf32>
    %107 = vector.broadcast %106 : vector<8x1xf32> to vector<8x16xf32>
    %108 = arith.mulf %104, %107 : vector<8x16xf32>
    %cst_58 = arith.constant dense<0.000000e+00> : vector<16xf32>
    %109 = vector.multi_reduction <add>, %108, %cst_58 [0] : vector<8x16xf32> to vector<16xf32>
    %110 = vector.shape_cast %109 : vector<16xf32> to vector<1x16xf32>
    %111 = vector.broadcast %103 : vector<16x1xf32> to vector<16x16xf32>
    %112 = vector.broadcast %110 : vector<1x16xf32> to vector<16x16xf32>
    %113 = arith.addf %111, %112 : vector<16x16xf32>
    %cst_59 = arith.constant 0.000000e+00 : f32
    %114 = vector.broadcast %cst_59 : f32 to vector<16x16xf32>
    %115 = arith.cmpf ogt, %113, %114 : vector<16x16xf32>
    %cst_60 = arith.constant 2.000000e-01 : f32
    %116 = vector.broadcast %cst_60 : f32 to vector<16x16xf32>
    %117 = arith.mulf %116, %113 : vector<16x16xf32>
    %118 = arith.select %115, %113, %117 : vector<16x16xi1>, vector<16x16xf32>
    %119 = arith.addf %118, %5 : vector<16x16xf32>
    %cst_61 = arith.constant dense<0xFF800000> : vector<16xf32>
    %120 = vector.multi_reduction <maximumf>, %119, %cst_61 [1] : vector<16x16xf32> to vector<16xf32>
    %121 = vector.shape_cast %120 : vector<16xf32> to vector<16x1xf32>
    %122 = vector.broadcast %121 : vector<16x1xf32> to vector<16x16xf32>
    %123 = arith.subf %119, %122 : vector<16x16xf32>
    %124 = math.exp %123 : vector<16x16xf32>
    %cst_62 = arith.constant dense<0.000000e+00> : vector<16xf32>
    %125 = vector.multi_reduction <add>, %124, %cst_62 [1] : vector<16x16xf32> to vector<16xf32>
    %126 = vector.shape_cast %125 : vector<16xf32> to vector<16x1xf32>
    %cst_63 = arith.constant 9.99999968E-21 : f32
    %127 = vector.broadcast %cst_63 : f32 to vector<16x1xf32>
    %128 = arith.maximumf %126, %127 : vector<16x1xf32>
    %129 = tpu.reciprocal %128 {approx = true} : vector<16x1xf32> -> vector<16x1xf32>
    %cst_64 = arith.constant dense<0.000000e+00> : vector<16x8xf32>
    %130 = tpu.matmul %124, %97, %cst_64 {dimension_numbers = #tpu.dot_dimension_numbers<[1], [0], [0], [1], [0, 0, 1, 1], [], []>} : vector<16x16xf32>, vector<16x8xf32>, vector<16x8xf32> -> vector<16x8xf32>
    %131 = vector.broadcast %129 : vector<16x1xf32> to vector<16x8xf32>
    %132 = arith.mulf %130, %131 : vector<16x8xf32>
    %c2_65 = arith.constant 2 : index
    %c0_66 = arith.constant 0 : index
    %c0_67 = arith.constant 0 : index
    %133 = vector.load %arg6[%c2_65, %c0_66, %c0_67] : memref<6x1x8xf32, #tpu.memory_space<vmem>>, vector<1x1x8xf32>
    %134 = vector.shape_cast %133 : vector<1x1x8xf32> to vector<1x8xf32>
    %135 = vector.broadcast %134 : vector<1x8xf32> to vector<16x8xf32>
    %136 = arith.addf %132, %135 : vector<16x8xf32>
    %cst_68 = arith.constant 0.000000e+00 : f32
    %137 = vector.broadcast %cst_68 : f32 to vector<16x8xf32>
    %138 = arith.maximumf %136, %137 : vector<16x8xf32>
    %c3 = arith.constant 3 : index
    %c0_69 = arith.constant 0 : index
    %c0_70 = arith.constant 0 : index
    %139 = vector.load %arg3[%c3, %c0_69, %c0_70] : memref<6x8x8xf32, #tpu.memory_space<vmem>>, vector<1x8x8xf32>
    %140 = vector.shape_cast %139 : vector<1x8x8xf32> to vector<8x8xf32>
    %cst_71 = arith.constant dense<0.000000e+00> : vector<16x8xf32>
    %141 = tpu.matmul %138, %140, %cst_71 {dimension_numbers = #tpu.dot_dimension_numbers<[1], [0], [0], [1], [0, 0, 1, 1], [], []>} : vector<16x8xf32>, vector<8x8xf32>, vector<16x8xf32> -> vector<16x8xf32>
    %c3_72 = arith.constant 3 : index
    %c0_73 = arith.constant 0 : index
    %c0_74 = arith.constant 0 : index
    %142 = vector.load %arg4[%c3_72, %c0_73, %c0_74] : memref<6x1x8xf32, #tpu.memory_space<vmem>>, vector<1x1x8xf32>
    %143 = vector.shape_cast %142 : vector<1x1x8xf32> to vector<1x8xf32>
    %144 = vector.broadcast %143 : vector<1x8xf32> to vector<16x8xf32>
    %145 = arith.mulf %141, %144 : vector<16x8xf32>
    %cst_75 = arith.constant dense<0.000000e+00> : vector<16xf32>
    %146 = vector.multi_reduction <add>, %145, %cst_75 [1] : vector<16x8xf32> to vector<16xf32>
    %147 = vector.shape_cast %146 : vector<16xf32> to vector<16x1xf32>
    %148 = tpu.transpose %141, [1, 0] : vector<16x8xf32> -> vector<8x16xf32>
    %c3_76 = arith.constant 3 : index
    %c0_77 = arith.constant 0 : index
    %c0_78 = arith.constant 0 : index
    %149 = vector.load %arg5[%c3_76, %c0_77, %c0_78] : memref<6x8x1xf32, #tpu.memory_space<vmem>>, vector<1x8x1xf32>
    %150 = vector.shape_cast %149 : vector<1x8x1xf32> to vector<8x1xf32>
    %151 = vector.broadcast %150 : vector<8x1xf32> to vector<8x16xf32>
    %152 = arith.mulf %148, %151 : vector<8x16xf32>
    %cst_79 = arith.constant dense<0.000000e+00> : vector<16xf32>
    %153 = vector.multi_reduction <add>, %152, %cst_79 [0] : vector<8x16xf32> to vector<16xf32>
    %154 = vector.shape_cast %153 : vector<16xf32> to vector<1x16xf32>
    %155 = vector.broadcast %147 : vector<16x1xf32> to vector<16x16xf32>
    %156 = vector.broadcast %154 : vector<1x16xf32> to vector<16x16xf32>
    %157 = arith.addf %155, %156 : vector<16x16xf32>
    %cst_80 = arith.constant 0.000000e+00 : f32
    %158 = vector.broadcast %cst_80 : f32 to vector<16x16xf32>
    %159 = arith.cmpf ogt, %157, %158 : vector<16x16xf32>
    %cst_81 = arith.constant 2.000000e-01 : f32
    %160 = vector.broadcast %cst_81 : f32 to vector<16x16xf32>
    %161 = arith.mulf %160, %157 : vector<16x16xf32>
    %162 = arith.select %159, %157, %161 : vector<16x16xi1>, vector<16x16xf32>
    %163 = arith.addf %162, %5 : vector<16x16xf32>
    %cst_82 = arith.constant dense<0xFF800000> : vector<16xf32>
    %164 = vector.multi_reduction <maximumf>, %163, %cst_82 [1] : vector<16x16xf32> to vector<16xf32>
    %165 = vector.shape_cast %164 : vector<16xf32> to vector<16x1xf32>
    %166 = vector.broadcast %165 : vector<16x1xf32> to vector<16x16xf32>
    %167 = arith.subf %163, %166 : vector<16x16xf32>
    %168 = math.exp %167 : vector<16x16xf32>
    %cst_83 = arith.constant dense<0.000000e+00> : vector<16xf32>
    %169 = vector.multi_reduction <add>, %168, %cst_83 [1] : vector<16x16xf32> to vector<16xf32>
    %170 = vector.shape_cast %169 : vector<16xf32> to vector<16x1xf32>
    %cst_84 = arith.constant 9.99999968E-21 : f32
    %171 = vector.broadcast %cst_84 : f32 to vector<16x1xf32>
    %172 = arith.maximumf %170, %171 : vector<16x1xf32>
    %173 = tpu.reciprocal %172 {approx = true} : vector<16x1xf32> -> vector<16x1xf32>
    %cst_85 = arith.constant dense<0.000000e+00> : vector<16x8xf32>
    %174 = tpu.matmul %168, %141, %cst_85 {dimension_numbers = #tpu.dot_dimension_numbers<[1], [0], [0], [1], [0, 0, 1, 1], [], []>} : vector<16x16xf32>, vector<16x8xf32>, vector<16x8xf32> -> vector<16x8xf32>
    %175 = vector.broadcast %173 : vector<16x1xf32> to vector<16x8xf32>
    %176 = arith.mulf %174, %175 : vector<16x8xf32>
    %c3_86 = arith.constant 3 : index
    %c0_87 = arith.constant 0 : index
    %c0_88 = arith.constant 0 : index
    %177 = vector.load %arg6[%c3_86, %c0_87, %c0_88] : memref<6x1x8xf32, #tpu.memory_space<vmem>>, vector<1x1x8xf32>
    %178 = vector.shape_cast %177 : vector<1x1x8xf32> to vector<1x8xf32>
    %179 = vector.broadcast %178 : vector<1x8xf32> to vector<16x8xf32>
    %180 = arith.addf %176, %179 : vector<16x8xf32>
    %cst_89 = arith.constant 0.000000e+00 : f32
    %181 = vector.broadcast %cst_89 : f32 to vector<16x8xf32>
    %182 = arith.maximumf %180, %181 : vector<16x8xf32>
    %c4 = arith.constant 4 : index
    %c0_90 = arith.constant 0 : index
    %c0_91 = arith.constant 0 : index
    %183 = vector.load %arg3[%c4, %c0_90, %c0_91] : memref<6x8x8xf32, #tpu.memory_space<vmem>>, vector<1x8x8xf32>
    %184 = vector.shape_cast %183 : vector<1x8x8xf32> to vector<8x8xf32>
    %cst_92 = arith.constant dense<0.000000e+00> : vector<16x8xf32>
    %185 = tpu.matmul %182, %184, %cst_92 {dimension_numbers = #tpu.dot_dimension_numbers<[1], [0], [0], [1], [0, 0, 1, 1], [], []>} : vector<16x8xf32>, vector<8x8xf32>, vector<16x8xf32> -> vector<16x8xf32>
    %c4_93 = arith.constant 4 : index
    %c0_94 = arith.constant 0 : index
    %c0_95 = arith.constant 0 : index
    %186 = vector.load %arg4[%c4_93, %c0_94, %c0_95] : memref<6x1x8xf32, #tpu.memory_space<vmem>>, vector<1x1x8xf32>
    %187 = vector.shape_cast %186 : vector<1x1x8xf32> to vector<1x8xf32>
    %188 = vector.broadcast %187 : vector<1x8xf32> to vector<16x8xf32>
    %189 = arith.mulf %185, %188 : vector<16x8xf32>
    %cst_96 = arith.constant dense<0.000000e+00> : vector<16xf32>
    %190 = vector.multi_reduction <add>, %189, %cst_96 [1] : vector<16x8xf32> to vector<16xf32>
    %191 = vector.shape_cast %190 : vector<16xf32> to vector<16x1xf32>
    %192 = tpu.transpose %185, [1, 0] : vector<16x8xf32> -> vector<8x16xf32>
    %c4_97 = arith.constant 4 : index
    %c0_98 = arith.constant 0 : index
    %c0_99 = arith.constant 0 : index
    %193 = vector.load %arg5[%c4_97, %c0_98, %c0_99] : memref<6x8x1xf32, #tpu.memory_space<vmem>>, vector<1x8x1xf32>
    %194 = vector.shape_cast %193 : vector<1x8x1xf32> to vector<8x1xf32>
    %195 = vector.broadcast %194 : vector<8x1xf32> to vector<8x16xf32>
    %196 = arith.mulf %192, %195 : vector<8x16xf32>
    %cst_100 = arith.constant dense<0.000000e+00> : vector<16xf32>
    %197 = vector.multi_reduction <add>, %196, %cst_100 [0] : vector<8x16xf32> to vector<16xf32>
    %198 = vector.shape_cast %197 : vector<16xf32> to vector<1x16xf32>
    %199 = vector.broadcast %191 : vector<16x1xf32> to vector<16x16xf32>
    %200 = vector.broadcast %198 : vector<1x16xf32> to vector<16x16xf32>
    %201 = arith.addf %199, %200 : vector<16x16xf32>
    %cst_101 = arith.constant 0.000000e+00 : f32
    %202 = vector.broadcast %cst_101 : f32 to vector<16x16xf32>
    %203 = arith.cmpf ogt, %201, %202 : vector<16x16xf32>
    %cst_102 = arith.constant 2.000000e-01 : f32
    %204 = vector.broadcast %cst_102 : f32 to vector<16x16xf32>
    %205 = arith.mulf %204, %201 : vector<16x16xf32>
    %206 = arith.select %203, %201, %205 : vector<16x16xi1>, vector<16x16xf32>
    %207 = arith.addf %206, %5 : vector<16x16xf32>
    %cst_103 = arith.constant dense<0xFF800000> : vector<16xf32>
    %208 = vector.multi_reduction <maximumf>, %207, %cst_103 [1] : vector<16x16xf32> to vector<16xf32>
    %209 = vector.shape_cast %208 : vector<16xf32> to vector<16x1xf32>
    %210 = vector.broadcast %209 : vector<16x1xf32> to vector<16x16xf32>
    %211 = arith.subf %207, %210 : vector<16x16xf32>
    %212 = math.exp %211 : vector<16x16xf32>
    %cst_104 = arith.constant dense<0.000000e+00> : vector<16xf32>
    %213 = vector.multi_reduction <add>, %212, %cst_104 [1] : vector<16x16xf32> to vector<16xf32>
    %214 = vector.shape_cast %213 : vector<16xf32> to vector<16x1xf32>
    %cst_105 = arith.constant 9.99999968E-21 : f32
    %215 = vector.broadcast %cst_105 : f32 to vector<16x1xf32>
    %216 = arith.maximumf %214, %215 : vector<16x1xf32>
    %217 = tpu.reciprocal %216 {approx = true} : vector<16x1xf32> -> vector<16x1xf32>
    %cst_106 = arith.constant dense<0.000000e+00> : vector<16x8xf32>
    %218 = tpu.matmul %212, %185, %cst_106 {dimension_numbers = #tpu.dot_dimension_numbers<[1], [0], [0], [1], [0, 0, 1, 1], [], []>} : vector<16x16xf32>, vector<16x8xf32>, vector<16x8xf32> -> vector<16x8xf32>
    %219 = vector.broadcast %217 : vector<16x1xf32> to vector<16x8xf32>
    %220 = arith.mulf %218, %219 : vector<16x8xf32>
    %c4_107 = arith.constant 4 : index
    %c0_108 = arith.constant 0 : index
    %c0_109 = arith.constant 0 : index
    %221 = vector.load %arg6[%c4_107, %c0_108, %c0_109] : memref<6x1x8xf32, #tpu.memory_space<vmem>>, vector<1x1x8xf32>
    %222 = vector.shape_cast %221 : vector<1x1x8xf32> to vector<1x8xf32>
    %223 = vector.broadcast %222 : vector<1x8xf32> to vector<16x8xf32>
    %224 = arith.addf %220, %223 : vector<16x8xf32>
    %cst_110 = arith.constant 0.000000e+00 : f32
    %225 = vector.broadcast %cst_110 : f32 to vector<16x8xf32>
    %226 = arith.maximumf %224, %225 : vector<16x8xf32>
    %c5 = arith.constant 5 : index
    %c0_111 = arith.constant 0 : index
    %c0_112 = arith.constant 0 : index
    %227 = vector.load %arg3[%c5, %c0_111, %c0_112] : memref<6x8x8xf32, #tpu.memory_space<vmem>>, vector<1x8x8xf32>
    %228 = vector.shape_cast %227 : vector<1x8x8xf32> to vector<8x8xf32>
    %cst_113 = arith.constant dense<0.000000e+00> : vector<16x8xf32>
    %229 = tpu.matmul %226, %228, %cst_113 {dimension_numbers = #tpu.dot_dimension_numbers<[1], [0], [0], [1], [0, 0, 1, 1], [], []>} : vector<16x8xf32>, vector<8x8xf32>, vector<16x8xf32> -> vector<16x8xf32>
    %c5_114 = arith.constant 5 : index
    %c0_115 = arith.constant 0 : index
    %c0_116 = arith.constant 0 : index
    %230 = vector.load %arg4[%c5_114, %c0_115, %c0_116] : memref<6x1x8xf32, #tpu.memory_space<vmem>>, vector<1x1x8xf32>
    %231 = vector.shape_cast %230 : vector<1x1x8xf32> to vector<1x8xf32>
    %232 = vector.broadcast %231 : vector<1x8xf32> to vector<16x8xf32>
    %233 = arith.mulf %229, %232 : vector<16x8xf32>
    %cst_117 = arith.constant dense<0.000000e+00> : vector<16xf32>
    %234 = vector.multi_reduction <add>, %233, %cst_117 [1] : vector<16x8xf32> to vector<16xf32>
    %235 = vector.shape_cast %234 : vector<16xf32> to vector<16x1xf32>
    %236 = tpu.transpose %229, [1, 0] : vector<16x8xf32> -> vector<8x16xf32>
    %c5_118 = arith.constant 5 : index
    %c0_119 = arith.constant 0 : index
    %c0_120 = arith.constant 0 : index
    %237 = vector.load %arg5[%c5_118, %c0_119, %c0_120] : memref<6x8x1xf32, #tpu.memory_space<vmem>>, vector<1x8x1xf32>
    %238 = vector.shape_cast %237 : vector<1x8x1xf32> to vector<8x1xf32>
    %239 = vector.broadcast %238 : vector<8x1xf32> to vector<8x16xf32>
    %240 = arith.mulf %236, %239 : vector<8x16xf32>
    %cst_121 = arith.constant dense<0.000000e+00> : vector<16xf32>
    %241 = vector.multi_reduction <add>, %240, %cst_121 [0] : vector<8x16xf32> to vector<16xf32>
    %242 = vector.shape_cast %241 : vector<16xf32> to vector<1x16xf32>
    %243 = vector.broadcast %235 : vector<16x1xf32> to vector<16x16xf32>
    %244 = vector.broadcast %242 : vector<1x16xf32> to vector<16x16xf32>
    %245 = arith.addf %243, %244 : vector<16x16xf32>
    %cst_122 = arith.constant 0.000000e+00 : f32
    %246 = vector.broadcast %cst_122 : f32 to vector<16x16xf32>
    %247 = arith.cmpf ogt, %245, %246 : vector<16x16xf32>
    %cst_123 = arith.constant 2.000000e-01 : f32
    %248 = vector.broadcast %cst_123 : f32 to vector<16x16xf32>
    %249 = arith.mulf %248, %245 : vector<16x16xf32>
    %250 = arith.select %247, %245, %249 : vector<16x16xi1>, vector<16x16xf32>
    %251 = arith.addf %250, %5 : vector<16x16xf32>
    %cst_124 = arith.constant dense<0xFF800000> : vector<16xf32>
    %252 = vector.multi_reduction <maximumf>, %251, %cst_124 [1] : vector<16x16xf32> to vector<16xf32>
    %253 = vector.shape_cast %252 : vector<16xf32> to vector<16x1xf32>
    %254 = vector.broadcast %253 : vector<16x1xf32> to vector<16x16xf32>
    %255 = arith.subf %251, %254 : vector<16x16xf32>
    %256 = math.exp %255 : vector<16x16xf32>
    %cst_125 = arith.constant dense<0.000000e+00> : vector<16xf32>
    %257 = vector.multi_reduction <add>, %256, %cst_125 [1] : vector<16x16xf32> to vector<16xf32>
    %258 = vector.shape_cast %257 : vector<16xf32> to vector<16x1xf32>
    %cst_126 = arith.constant 9.99999968E-21 : f32
    %259 = vector.broadcast %cst_126 : f32 to vector<16x1xf32>
    %260 = arith.maximumf %258, %259 : vector<16x1xf32>
    %261 = tpu.reciprocal %260 {approx = true} : vector<16x1xf32> -> vector<16x1xf32>
    %cst_127 = arith.constant dense<0.000000e+00> : vector<16x8xf32>
    %262 = tpu.matmul %256, %229, %cst_127 {dimension_numbers = #tpu.dot_dimension_numbers<[1], [0], [0], [1], [0, 0, 1, 1], [], []>} : vector<16x16xf32>, vector<16x8xf32>, vector<16x8xf32> -> vector<16x8xf32>
    %263 = vector.broadcast %261 : vector<16x1xf32> to vector<16x8xf32>
    %264 = arith.mulf %262, %263 : vector<16x8xf32>
    %c5_128 = arith.constant 5 : index
    %c0_129 = arith.constant 0 : index
    %c0_130 = arith.constant 0 : index
    %265 = vector.load %arg6[%c5_128, %c0_129, %c0_130] : memref<6x1x8xf32, #tpu.memory_space<vmem>>, vector<1x1x8xf32>
    %266 = vector.shape_cast %265 : vector<1x1x8xf32> to vector<1x8xf32>
    %267 = vector.broadcast %266 : vector<1x8xf32> to vector<16x8xf32>
    %268 = arith.addf %264, %267 : vector<16x8xf32>
    %cst_131 = arith.constant 0.000000e+00 : f32
    %269 = vector.broadcast %cst_131 : f32 to vector<16x8xf32>
    %270 = arith.maximumf %268, %269 : vector<16x8xf32>
    %c0_132 = arith.constant 0 : index
    %c0_133 = arith.constant 0 : index
    %271 = vector.load %arg2[%c0_132, %c0_133] : memref<2x16xf32, #tpu.memory_space<vmem>>, vector<2x16xf32>
    %cst_134 = arith.constant dense<0.000000e+00> : vector<2x8xf32>
    %272 = tpu.matmul %271, %270, %cst_134 {dimension_numbers = #tpu.dot_dimension_numbers<[1], [0], [0], [1], [0, 0, 1, 1], [], []>} : vector<2x16xf32>, vector<16x8xf32>, vector<2x8xf32> -> vector<2x8xf32>
    %c0_135 = arith.constant 0 : index
    %c0_136 = arith.constant 0 : index
    %273 = vector.load %arg7[%c0_135, %c0_136] : memref<8x8xf32, #tpu.memory_space<vmem>>, vector<8x8xf32>
    %cst_137 = arith.constant dense<0.000000e+00> : vector<2x8xf32>
    %274 = tpu.matmul %272, %273, %cst_137 {dimension_numbers = #tpu.dot_dimension_numbers<[1], [0], [0], [1], [0, 0, 1, 1], [], []>} : vector<2x8xf32>, vector<8x8xf32>, vector<2x8xf32> -> vector<2x8xf32>
    %c0_138 = arith.constant 0 : index
    %c0_139 = arith.constant 0 : index
    %275 = vector.load %arg8[%c0_138, %c0_139] : memref<1x8xf32, #tpu.memory_space<vmem>>, vector<1x8xf32>
    %276 = vector.broadcast %275 : vector<1x8xf32> to vector<2x8xf32>
    %277 = arith.addf %274, %276 : vector<2x8xf32>
    %cst_140 = arith.constant 0.000000e+00 : f32
    %278 = vector.broadcast %cst_140 : f32 to vector<2x8xf32>
    %279 = arith.maximumf %277, %278 : vector<2x8xf32>
    %c0_141 = arith.constant 0 : index
    %c0_142 = arith.constant 0 : index
    %280 = vector.load %arg9[%c0_141, %c0_142] : memref<8x2xf32, #tpu.memory_space<vmem>>, vector<8x2xf32>
    %cst_143 = arith.constant dense<0.000000e+00> : vector<2x2xf32>
    %281 = tpu.matmul %279, %280, %cst_143 {dimension_numbers = #tpu.dot_dimension_numbers<[1], [0], [0], [1], [0, 0, 1, 1], [], []>} : vector<2x8xf32>, vector<8x2xf32>, vector<2x2xf32> -> vector<2x2xf32>
    %c0_144 = arith.constant 0 : index
    %c0_145 = arith.constant 0 : index
    %282 = vector.load %arg10[%c0_144, %c0_145] : memref<1x2xf32, #tpu.memory_space<vmem>>, vector<1x2xf32>
    %283 = vector.broadcast %282 : vector<1x2xf32> to vector<2x2xf32>
    %284 = arith.addf %281, %283 : vector<2x2xf32>
    %c0_146 = arith.constant 0 : index
    %c0_147 = arith.constant 0 : index
    %285 = vector.load %arg11[%c0_146, %c0_147] : memref<2x2xf32, #tpu.memory_space<vmem>>, vector<2x2xf32>
    tpu.vector_store %arg11[%c0_146, %c0_147], %284 {strides = array<i32>} : memref<2x2xf32, #tpu.memory_space<vmem>>, vector<2x2xf32>,
    return
  }
}

</mosaic_0001>

<llo_original>
// kernel: gatnet_mse_forward.1
$region0: #{gatnet_mse_forward.1}
  #allocation0 [shape = 'u32[]', space=smem, size = 0x4, offset = 0x4, fixed_abs, tag = 'smem constant byte address 0x4 - core index']
  #allocation1 [shape = 'u32[72,128]{1,0:T(1,128)}', space=vmem, size = 0x9000, scoped, tag = 'internal scratch']
  %s0 = inlined_call_operand.vmem [shape: f32[16,8], index: 0, kind: input, shape index: {}]
  %s1 = inlined_call_operand.vmem [shape: f32[16,16], index: 1, kind: input, shape index: {}]
  %s2 = inlined_call_operand.vmem [shape: f32[2,16], index: 2, kind: input, shape index: {}]
  %s3 = inlined_call_operand.vmem [shape: f32[6,8,8], index: 3, kind: input, shape index: {}]
  %s4 = inlined_call_operand.vmem [shape: f32[6,1,8], index: 4, kind: input, shape index: {}]
  %s5 = inlined_call_operand.vmem [shape: f32[6,8,1], index: 5, kind: input, shape index: {}]
  %s6 = inlined_call_operand.vmem [shape: f32[6,1,8], index: 6, kind: input, shape index: {}]
  %s7 = inlined_call_operand.vmem [shape: f32[8,8], index: 7, kind: input, shape index: {}]
  %s8 = inlined_call_operand.vmem [shape: f32[1,8], index: 8, kind: input, shape index: {}]
  %s9 = inlined_call_operand.vmem [shape: f32[8,2], index: 9, kind: input, shape index: {}]
  %s10 = inlined_call_operand.vmem [shape: f32[1,2], index: 10, kind: input, shape index: {}]
  %s11 = inlined_call_operand.hbm [shape: f32[2,2], index: 11, kind: output, shape index: {}]
  %s12 = sld [smem:[#allocation0]]
  $region54: #{gatnet_mse_forward.1} parent=0
    _
  %s14 = ssub.s32 1, %s12
  %s15 = scalar_select 0, %s14, %s12
  $region1: #{gatnet_mse_forward.1} parent=0
    #allocation2 [shape = 'u8[1024]{0}', space=vmem, size = 0x400, scoped, tag = 'output window, operand 0, single buffered']
    #allocation3 [shape = 's32[1]{0}', space=sflag, size = 0x4, scoped, tag = 'scoped memory for gatnet_mse_forward.1']
    %16 = vsyncpa [#allocation3], 0
    // Predicated region
    $region2: #{gatnet_mse_forward.1} parent=1 // pred_check
      _
    $region3: #{gatnet_mse_forward.1} parent=1 // pred_check_branch
      %18 = sbr.rel (0) target = $region5
    $region4: #{gatnet_mse_forward.1} parent=1 // pred_region
      _
    $region5: #{gatnet_mse_forward.1} parent=1 // pred_fallthru
      _
    // Predicated region
    $region6: #{gatnet_mse_forward.1} parent=1 // pred_check
      _
    $region7: #{gatnet_mse_forward.1} parent=1 // pred_check_branch
      %20 = sbr.rel (0) target = $region9
    $region8: #{gatnet_mse_forward.1} parent=1 // pred_region
      _
    $region9: #{gatnet_mse_forward.1} parent=1 // pred_fallthru
      _
    // Predicated region
    $region10: #{gatnet_mse_forward.1} parent=1 // pred_check
      _
    $region11: #{gatnet_mse_forward.1} parent=1 // pred_check_branch
      %22 = sbr.rel (0) target = $region13
    $region12: #{gatnet_mse_forward.1} parent=1 // pred_region
      _
    $region13: #{gatnet_mse_forward.1} parent=1 // pred_fallthru
      _
    // Predicated region
    $region14: #{gatnet_mse_forward.1} parent=1 // pred_check
      _
    $region15: #{gatnet_mse_forward.1} parent=1 // pred_check_branch
      %24 = sbr.rel (0) target = $region17
    $region16: #{gatnet_mse_forward.1} parent=1 // pred_region
      _
    $region17: #{gatnet_mse_forward.1} parent=1 // pred_fallthru
      _
    // Predicated region
    $region18: #{gatnet_mse_forward.1} parent=1 // pred_check
      _
    $region19: #{gatnet_mse_forward.1} parent=1 // pred_check_branch
      %26 = sbr.rel (0) target = $region21
    $region20: #{gatnet_mse_forward.1} parent=1 // pred_region
      _
    $region21: #{gatnet_mse_forward.1} parent=1 // pred_fallthru
      _
    // Predicated region
    $region22: #{gatnet_mse_forward.1} parent=1 // pred_check
      _
    $region23: #{gatnet_mse_forward.1} parent=1 // pred_check_branch
      %28 = sbr.rel (0) target = $region25
    $region24: #{gatnet_mse_forward.1} parent=1 // pred_region
      _
    $region25: #{gatnet_mse_forward.1} parent=1 // pred_fallthru
      _
    // Predicated region
    $region26: #{gatnet_mse_forward.1} parent=1 // pred_check
      _
    $region27: #{gatnet_mse_forward.1} parent=1 // pred_check_branch
      %30 = sbr.rel (0) target = $region29
    $region28: #{gatnet_mse_forward.1} parent=1 // pred_region
      _
    $region29: #{gatnet_mse_forward.1} parent=1 // pred_fallthru
      _
    // Predicated region
    $region30: #{gatnet_mse_forward.1} parent=1 // pred_check
      _
    $region31: #{gatnet_mse_forward.1} parent=1 // pred_check_branch
      %32 = sbr.rel (0) target = $region33
    $region32: #{gatnet_mse_forward.1} parent=1 // pred_region
      _
    $region33: #{gatnet_mse_forward.1} parent=1 // pred_fallthru
      _
    // Predicated region
    $region34: #{gatnet_mse_forward.1} parent=1 // pred_check
      _
    $region35: #{gatnet_mse_forward.1} parent=1 // pred_check_branch
      %34 = sbr.rel (0) target = $region37
    $region36: #{gatnet_mse_forward.1} parent=1 // pred_region
      _
    $region37: #{gatnet_mse_forward.1} parent=1 // pred_fallthru
      _
    // Predicated region
    $region38: #{gatnet_mse_forward.1} parent=1 // pred_check
      _
    $region39: #{gatnet_mse_forward.1} parent=1 // pred_check_branch
      %36 = sbr.rel (0) target = $region41
    $region40: #{gatnet_mse_forward.1} parent=1 // pred_region
      _
    $region41: #{gatnet_mse_forward.1} parent=1 // pred_fallthru
      _
    // Predicated region
    $region42: #{gatnet_mse_forward.1} parent=1 // pred_check
      _
    $region43: #{gatnet_mse_forward.1} parent=1 // pred_check_branch
      %38 = sbr.rel (0) target = $region45
    $region44: #{gatnet_mse_forward.1} parent=1 // pred_region
      _
    $region45: #{gatnet_mse_forward.1} parent=1 // pred_fallthru
      _
    %v39 = vld [vmem:[%s1] sm:$0xff]
    %v40 = vld [vmem:[%s1 + $0x8] sm:$0xff]
    %vm41 = vcmp.gt.f32.partialorder %v39, 0.0
    %vm42 = vcmp.gt.f32.partialorder %v40, 0.0
    %v43 = vsel %vm41, 0.0, -1e+30
    %v44 = vsel %vm42, 0.0, -1e+30
    %v45 = vld [vmem:[%s0] sm:$0xff]
    %v46 = vld [vmem:[%s0 + $0x8] sm:$0xff]
    %v47 = vld [vmem:[%s3] sm:$0xff]
    %vm48 = vcmask 64512
    %v50 = vsel %vm48, %v45, 0
    %v53 = vsel %vm48, %v46, 0
    %55 = vmatpush.msra.mxu0 0.0
    %56 = vmatpush.msra.mxu0 0.0
    %57 = vmatpush.msra.mxu0 0.0
    %58 = vmatpush.msra.mxu0 0.0
    %59 = vmatpush.msra.mxu0 0.0
    %60 = vmatpush.msra.mxu0 0.0
    %61 = vmatpush.msra.mxu0 0.0
    %62 = vmatpush.msra.mxu0 0.0
    %63 = vmatpush.msra.mxu0 0.0
    %64 = vmatpush.msra.mxu0 0.0
    %65 = vmatpush.msra.mxu0 0.0
    %66 = vmatpush.msra.mxu0 0.0
    %67 = vmatpush.msra.mxu0 0.0
    %68 = vmatpush.msra.mxu0 0.0
    %69 = vmatpush.msra.mxu0 0.0
    %70 = vmatpush.msra.mxu0 %v47
    %71 = vmatmul.f32.gmra.mxu0 %v50
    %v72 = vpop.f32.mrf.mxu0
    %v73 = vadd.f32 0.0, %v72
    %74 = vmatmul.f32.gmra.mxu0 %v53
    %v75 = vpop.f32.mrf.mxu0
    %v76 = vadd.f32 0.0, %v75
    %77 = vdwg.mxu0
    %v78 = vld [vmem:[%s4] sm:$0x1]
    %v80 = vperm.slane %v78, 0
    %v82 = vmul.f32 %v73, %v80
    %v83 = vmul.f32 %v76, %v80
    %v84 = vsel %vm48, %v82, 0.0
    %85 = vadd.xlane.f32.xlu0 %v84
    %v86 = vpop.xlane.xlu0 %85
    %v87 = vsel %vm48, %v83, 0.0
    %88 = vadd.xlane.f32.xlu0 %v87
    %v89 = vpop.xlane.xlu0 %88
    %90 = vxpose.xlu0.b32.start [1/16] %v73, 128
    %91 = vxpose.xlu0.b32.cont [2/16] %v76, 128
    %92 = vxpose.xlu0.b32.cont [3/16] 0.0, 128
    %93 = vxpose.xlu0.b32.cont [4/16] 0.0, 128
    %94 = vxpose.xlu0.b32.cont [5/16] 0.0, 128
    %95 = vxpose.xlu0.b32.cont [6/16] 0.0, 128
    %96 = vxpose.xlu0.b32.cont [7/16] 0.0, 128
    %97 = vxpose.xlu0.b32.cont [8/16] 0.0, 128
    %98 = vxpose.xlu0.b32.cont [9/16] 0.0, 128
    %99 = vxpose.xlu0.b32.cont [10/16] 0.0, 128
    %100 = vxpose.xlu0.b32.cont [11/16] 0.0, 128
    %101 = vxpose.xlu0.b32.cont [12/16] 0.0, 128
    %102 = vxpose.xlu0.b32.cont [13/16] 0.0, 128
    %103 = vxpose.xlu0.b32.cont [14/16] 0.0, 128
    %104 = vxpose.xlu0.b32.cont [15/16] 0.0, 128
    %105 = vxpose.xlu0.b32.end [16/16] 0.0, 128
    %v106 = vpop.trf.xlu0
    %v107 = vpop.trf.xlu0
    %v108 = vpop.trf.xlu0
    %v109 = vpop.trf.xlu0
    %v110 = vpop.trf.xlu0
    %v111 = vpop.trf.xlu0
    %v112 = vpop.trf.xlu0
    %v113 = vpop.trf.xlu0
    %v114 = vpop.trf.xlu0
    %v115 = vpop.trf.xlu0
    %v116 = vpop.trf.xlu0
    %v117 = vpop.trf.xlu0
    %v118 = vpop.trf.xlu0
    %v119 = vpop.trf.xlu0
    %v120 = vpop.trf.xlu0
    %v121 = vpop.trf.xlu0
    %v122 = vld [vmem:[%s5] sm:$0xff]
    %124 = vset.pattern.permute.xlu0 0
    %125 = vperm.xlu0 %124, %v122
    %v126 = vpop.permute.xlu0 %125
    %v128 = vmul.f32 %v106, %v126
    %vm129 = vcmask 130048
    %v130 = vsel %vm129, %v128, 0.0
    %v131 = vrot.slane %v130, 4
    %v132 = vadd.f32 %v130, %v131
    %v133 = vrot.slane %v132, 2
    %v134 = vadd.f32 %v132, %v133
    %v135 = vrot.slane %v134, 1
    %v136 = vadd.f32 %v134, %v135
    %v137 = vadd.f32 %v86, %v136
    %v138 = vadd.f32 %v89, %v136
    %vm139 = vcmp.gt.f32.partialorder %v137, 0.0
    %vm140 = vcmp.gt.f32.partialorder %v138, 0.0
    %v141 = vmul.f32 %v137, 0.2
    %v142 = vmul.f32 %v138, 0.2
    %v143 = vsel %vm139, %v137, %v141
    %v144 = vsel %vm140, %v138, %v142
    %v145 = vadd.f32 %v143, %v43
    %v146 = vadd.f32 %v144, %v44
    %v147 = vsel %vm129, %v145, -inf
    %148 = vmax.xlane.f32.xlu0 %v147
    %v149 = vpop.xlane.xlu0 %148
    %v150 = vsel %vm129, %v146, -inf
    %151 = vmax.xlane.f32.xlu0 %v150
    %v152 = vpop.xlane.xlu0 %151
    %v153 = vsub.f32 %v145, %v149
    %v154 = vsub.f32 %v146, %v152
    %v155 = vmul.f32 %v153, 1.442695
    %v156 = vpow.pop %v155
    %v157 = vmul.f32 %v154, 1.442695
    %v158 = vpow.pop %v157
    %v159 = vsel %vm129, %v156, 0.0
    %160 = vadd.xlane.f32.xlu0 %v159
    %v161 = vpop.xlane.xlu0 %160
    %v162 = vsel %vm129, %v158, 0.0
    %163 = vadd.xlane.f32.xlu0 %v162
    %v164 = vpop.xlane.xlu0 %163
    %v165 = vmax.f32 %v161, 1e-20
    %v166 = vmax.f32 %v164, 1e-20
    %v167 = vrcp.pop %v165
    %v168 = vrcp.pop %v166
    %v170 = vsel %vm129, %v156, 0
    %v173 = vsel %vm129, %v158, 0
    %175 = vmatpush.msra.mxu0 0.0
    %176 = vmatpush.msra.mxu0 0.0
    %177 = vmatpush.msra.mxu0 0.0
    %178 = vmatpush.msra.mxu0 0.0
    %179 = vmatpush.msra.mxu0 0.0
    %180 = vmatpush.msra.mxu0 0.0
    %181 = vmatpush.msra.mxu0 0.0
    %182 = vmatpush.msra.mxu0 0.0
    %183 = vmatpush.msra.mxu0 0.0
    %184 = vmatpush.msra.mxu0 0.0
    %185 = vmatpush.msra.mxu0 0.0
    %186 = vmatpush.msra.mxu0 0.0
    %187 = vmatpush.msra.mxu0 0.0
    %188 = vmatpush.msra.mxu0 0.0
    %189 = vmatpush.msra.mxu0 %v76
    %190 = vmatpush.msra.mxu0 %v73
    %191 = vmatmul.f32.gmra.mxu0 %v170
    %v192 = vpop.f32.mrf.mxu0
    %v193 = vadd.f32 0.0, %v192
    %194 = vmatmul.f32.gmra.mxu0 %v173
    %v195 = vpop.f32.mrf.mxu0
    %v196 = vadd.f32 0.0, %v195
    %197 = vdwg.mxu0
    %v198 = vmul.f32 %v193, %v167
    %v199 = vmul.f32 %v196, %v168
    %v200 = vld [vmem:[%s6] sm:$0x1]
    %v202 = vperm.slane %v200, 0
    %v204 = vadd.f32 %v198, %v202
    %v205 = vadd.f32 %v199, %v202
    %v206 = vmax.f32 %v204, 0.0
    %v207 = vmax.f32 %v205, 0.0
    %s208 = scalar_lea.vmem %s3, 8
    %v209 = vld [vmem:[%s208] sm:$0xff]
    %v211 = vsel %vm48, %v206, 0
    %v214 = vsel %vm48, %v207, 0
    %216 = vmatpush.msra.mxu0 0.0
    %217 = vmatpush.msra.mxu0 0.0
    %218 = vmatpush.msra.mxu0 0.0
    %219 = vmatpush.msra.mxu0 0.0
    %220 = vmatpush.msra.mxu0 0.0
    %221 = vmatpush.msra.mxu0 0.0
    %222 = vmatpush.msra.mxu0 0.0
    %223 = vmatpush.msra.mxu0 0.0
    %224 = vmatpush.msra.mxu0 0.0
    %225 = vmatpush.msra.mxu0 0.0
    %226 = vmatpush.msra.mxu0 0.0
    %227 = vmatpush.msra.mxu0 0.0
    %228 = vmatpush.msra.mxu0 0.0
    %229 = vmatpush.msra.mxu0 0.0
    %230 = vmatpush.msra.mxu0 0.0
    %231 = vmatpush.msra.mxu0 %v209
    %232 = vmatmul.f32.gmra.mxu0 %v211
    %v233 = vpop.f32.mrf.mxu0
    %v234 = vadd.f32 0.0, %v233
    %235 = vmatmul.f32.gmra.mxu0 %v214
    %v236 = vpop.f32.mrf.mxu0
    %v237 = vadd.f32 0.0, %v236
    %238 = vdwg.mxu0
    %s239 = scalar_lea.vmem %s4, 1
    %v240 = vld [vmem:[%s239] sm:$0x1]
    %v242 = vperm.slane %v240, 0
    %v244 = vmul.f32 %v234, %v242
    %v245 = vmul.f32 %v237, %v242
    %v246 = vsel %vm48, %v244, 0.0
    %247 = vadd.xlane.f32.xlu0 %v246
    %v248 = vpop.xlane.xlu0 %247
    %v249 = vsel %vm48, %v245, 0.0
    %250 = vadd.xlane.f32.xlu0 %v249
    %v251 = vpop.xlane.xlu0 %250
    %252 = vxpose.xlu0.b32.start [1/16] %v234, 128
    %253 = vxpose.xlu0.b32.cont [2/16] %v237, 128
    %254 = vxpose.xlu0.b32.cont [3/16] 0.0, 128
    %255 = vxpose.xlu0.b32.cont [4/16] 0.0, 128
    %256 = vxpose.xlu0.b32.cont [5/16] 0.0, 128
    %257 = vxpose.xlu0.b32.cont [6/16] 0.0, 128
    %258 = vxpose.xlu0.b32.cont [7/16] 0.0, 128
    %259 = vxpose.xlu0.b32.cont [8/16] 0.0, 128
    %260 = vxpose.xlu0.b32.cont [9/16] 0.0, 128
    %261 = vxpose.xlu0.b32.cont [10/16] 0.0, 128
    %262 = vxpose.xlu0.b32.cont [11/16] 0.0, 128
    %263 = vxpose.xlu0.b32.cont [12/16] 0.0, 128
    %264 = vxpose.xlu0.b32.cont [13/16] 0.0, 128
    %265 = vxpose.xlu0.b32.cont [14/16] 0.0, 128
    %266 = vxpose.xlu0.b32.cont [15/16] 0.0, 128
    %267 = vxpose.xlu0.b32.end [16/16] 0.0, 128
    %v268 = vpop.trf.xlu0
    %v269 = vpop.trf.xlu0
    %v270 = vpop.trf.xlu0
    %v271 = vpop.trf.xlu0
    %v272 = vpop.trf.xlu0
    %v273 = vpop.trf.xlu0
    %v274 = vpop.trf.xlu0
    %v275 = vpop.trf.xlu0
    %v276 = vpop.trf.xlu0
    %v277 = vpop.trf.xlu0
    %v278 = vpop.trf.xlu0
    %v279 = vpop.trf.xlu0
    %v280 = vpop.trf.xlu0
    %v281 = vpop.trf.xlu0
    %v282 = vpop.trf.xlu0
    %v283 = vpop.trf.xlu0
    %s284 = scalar_lea.vmem %s5, 8
    %v285 = vld [vmem:[%s284] sm:$0xff]
    %287 = vset.pattern.permute.xlu0 0
    %288 = vperm.xlu0 %287, %v285
    %v289 = vpop.permute.xlu0 %288
    %v291 = vmul.f32 %v268, %v289
    %v292 = vsel %vm129, %v291, 0.0
    %v293 = vrot.slane %v292, 4
    %v294 = vadd.f32 %v292, %v293
    %v295 = vrot.slane %v294, 2
    %v296 = vadd.f32 %v294, %v295
    %v297 = vrot.slane %v296, 1
    %v298 = vadd.f32 %v296, %v297
    %v299 = vadd.f32 %v248, %v298
    %v300 = vadd.f32 %v251, %v298
    %vm301 = vcmp.gt.f32.partialorder %v299, 0.0
    %vm302 = vcmp.gt.f32.partialorder %v300, 0.0
    %v303 = vmul.f32 %v299, 0.2
    %v304 = vmul.f32 %v300, 0.2
    %v305 = vsel %vm301, %v299, %v303
    %v306 = vsel %vm302, %v300, %v304
    %v307 = vadd.f32 %v305, %v43
    %v308 = vadd.f32 %v306, %v44
    %v309 = vsel %vm129, %v307, -inf
    %310 = vmax.xlane.f32.xlu0 %v309
    %v311 = vpop.xlane.xlu0 %310
    %v312 = vsel %vm129, %v308, -inf
    %313 = vmax.xlane.f32.xlu0 %v312
    %v314 = vpop.xlane.xlu0 %313
    %v315 = vsub.f32 %v307, %v311
    %v316 = vsub.f32 %v308, %v314
    %v317 = vmul.f32 %v315, 1.442695
    %v318 = vpow.pop %v317
    %v319 = vmul.f32 %v316, 1.442695
    %v320 = vpow.pop %v319
    %v321 = vsel %vm129, %v318, 0.0
    %322 = vadd.xlane.f32.xlu0 %v321
    %v323 = vpop.xlane.xlu0 %322
    %v324 = vsel %vm129, %v320, 0.0
    %325 = vadd.xlane.f32.xlu0 %v324
    %v326 = vpop.xlane.xlu0 %325
    %v327 = vmax.f32 %v323, 1e-20
    %v328 = vmax.f32 %v326, 1e-20
    %v329 = vrcp.pop %v327
    %v330 = vrcp.pop %v328
    %v332 = vsel %vm129, %v318, 0
    %v335 = vsel %vm129, %v320, 0
    %337 = vmatpush.msra.mxu0 0.0
    %338 = vmatpush.msra.mxu0 0.0
    %339 = vmatpush.msra.mxu0 0.0
    %340 = vmatpush.msra.mxu0 0.0
    %341 = vmatpush.msra.mxu0 0.0
    %342 = vmatpush.msra.mxu0 0.0
    %343 = vmatpush.msra.mxu0 0.0
    %344 = vmatpush.msra.mxu0 0.0
    %345 = vmatpush.msra.mxu0 0.0
    %346 = vmatpush.msra.mxu0 0.0
    %347 = vmatpush.msra.mxu0 0.0
    %348 = vmatpush.msra.mxu0 0.0
    %349 = vmatpush.msra.mxu0 0.0
    %350 = vmatpush.msra.mxu0 0.0
    %351 = vmatpush.msra.mxu0 %v237
    %352 = vmatpush.msra.mxu0 %v234
    %353 = vmatmul.f32.gmra.mxu0 %v332
    %v354 = vpop.f32.mrf.mxu0
    %v355 = vadd.f32 0.0, %v354
    %356 = vmatmul.f32.gmra.mxu0 %v335
    %v357 = vpop.f32.mrf.mxu0
    %v358 = vadd.f32 0.0, %v357
    %359 = vdwg.mxu0
    %v360 = vmul.f32 %v355, %v329
    %v361 = vmul.f32 %v358, %v330
    %s362 = scalar_lea.vmem %s6, 1
    %v363 = vld [vmem:[%s362] sm:$0x1]
    %v365 = vperm.slane %v363, 0
    %v367 = vadd.f32 %v360, %v365
    %v368 = vadd.f32 %v361, %v365
    %v369 = vmax.f32 %v367, 0.0
    %v370 = vmax.f32 %v368, 0.0
    %s371 = scalar_lea.vmem %s3, 16
    %v372 = vld [vmem:[%s371] sm:$0xff]
    %v374 = vsel %vm48, %v369, 0
    %v377 = vsel %vm48, %v370, 0
    %379 = vmatpush.msra.mxu0 0.0
    %380 = vmatpush.msra.mxu0 0.0
    %381 = vmatpush.msra.mxu0 0.0
    %382 = vmatpush.msra.mxu0 0.0
    %383 = vmatpush.msra.mxu0 0.0
    %384 = vmatpush.msra.mxu0 0.0
    %385 = vmatpush.msra.mxu0 0.0
    %386 = vmatpush.msra.mxu0 0.0
    %387 = vmatpush.msra.mxu0 0.0
    %388 = vmatpush.msra.mxu0 0.0
    %389 = vmatpush.msra.mxu0 0.0
    %390 = vmatpush.msra.mxu0 0.0
    %391 = vmatpush.msra.mxu0 0.0
    %392 = vmatpush.msra.mxu0 0.0
    %393 = vmatpush.msra.mxu0 0.0
    %394 = vmatpush.msra.mxu0 %v372
    %395 = vmatmul.f32.gmra.mxu0 %v374
    %v396 = vpop.f32.mrf.mxu0
    %v397 = vadd.f32 0.0, %v396
    %398 = vmatmul.f32.gmra.mxu0 %v377
    %v399 = vpop.f32.mrf.mxu0
    %v400 = vadd.f32 0.0, %v399
    %401 = vdwg.mxu0
    %s402 = scalar_lea.vmem %s4, 2
    %v403 = vld [vmem:[%s402] sm:$0x1]
    %v405 = vperm.slane %v403, 0
    %v407 = vmul.f32 %v397, %v405
    %v408 = vmul.f32 %v400, %v405
    %v409 = vsel %vm48, %v407, 0.0
    %410 = vadd.xlane.f32.xlu0 %v409
    %v411 = vpop.xlane.xlu0 %410
    %v412 = vsel %vm48, %v408, 0.0
    %413 = vadd.xlane.f32.xlu0 %v412
    %v414 = vpop.xlane.xlu0 %413
    %415 = vxpose.xlu0.b32.start [1/16] %v397, 128
    %416 = vxpose.xlu0.b32.cont [2/16] %v400, 128
    %417 = vxpose.xlu0.b32.cont [3/16] 0.0, 128
    %418 = vxpose.xlu0.b32.cont [4/16] 0.0, 128
    %419 = vxpose.xlu0.b32.cont [5/16] 0.0, 128
    %420 = vxpose.xlu0.b32.cont [6/16] 0.0, 128
    %421 = vxpose.xlu0.b32.cont [7/16] 0.0, 128
    %422 = vxpose.xlu0.b32.cont [8/16] 0.0, 128
    %423 = vxpose.xlu0.b32.cont [9/16] 0.0, 128
    %424 = vxpose.xlu0.b32.cont [10/16] 0.0, 128
    %425 = vxpose.xlu0.b32.cont [11/16] 0.0, 128
    %426 = vxpose.xlu0.b32.cont [12/16] 0.0, 128
    %427 = vxpose.xlu0.b32.cont [13/16] 0.0, 128
    %428 = vxpose.xlu0.b32.cont [14/16] 0.0, 128
    %429 = vxpose.xlu0.b32.cont [15/16] 0.0, 128
    %430 = vxpose.xlu0.b32.end [16/16] 0.0, 128
    %v431 = vpop.trf.xlu0
    %v432 = vpop.trf.xlu0
    %v433 = vpop.trf.xlu0
    %v434 = vpop.trf.xlu0
    %v435 = vpop.trf.xlu0
    %v436 = vpop.trf.xlu0
    %v437 = vpop.trf.xlu0
    %v438 = vpop.trf.xlu0
    %v439 = vpop.trf.xlu0
    %v440 = vpop.trf.xlu0
    %v441 = vpop.trf.xlu0
    %v442 = vpop.trf.xlu0
    %v443 = vpop.trf.xlu0
    %v444 = vpop.trf.xlu0
    %v445 = vpop.trf.xlu0
    %v446 = vpop.trf.xlu0
    %s447 = scalar_lea.vmem %s5, 16
    %v448 = vld [vmem:[%s447] sm:$0xff]
    %450 = vset.pattern.permute.xlu0 0
    %451 = vperm.xlu0 %450, %v448
    %v452 = vpop.permute.xlu0 %451
    %v454 = vmul.f32 %v431, %v452
    %v455 = vsel %vm129, %v454, 0.0
    %v456 = vrot.slane %v455, 4
    %v457 = vadd.f32 %v455, %v456
    %v458 = vrot.slane %v457, 2
    %v459 = vadd.f32 %v457, %v458
    %v460 = vrot.slane %v459, 1
    %v461 = vadd.f32 %v459, %v460
    %v462 = vadd.f32 %v411, %v461
    %v463 = vadd.f32 %v414, %v461
    %vm464 = vcmp.gt.f32.partialorder %v462, 0.0
    %vm465 = vcmp.gt.f32.partialorder %v463, 0.0
    %v466 = vmul.f32 %v462, 0.2
    %v467 = vmul.f32 %v463, 0.2
    %v468 = vsel %vm464, %v462, %v466
    %v469 = vsel %vm465, %v463, %v467
    %v470 = vadd.f32 %v468, %v43
    %v471 = vadd.f32 %v469, %v44
    %v472 = vsel %vm129, %v470, -inf
    %473 = vmax.xlane.f32.xlu0 %v472
    %v474 = vpop.xlane.xlu0 %473
    %v475 = vsel %vm129, %v471, -inf
    %476 = vmax.xlane.f32.xlu0 %v475
    %v477 = vpop.xlane.xlu0 %476
    %v478 = vsub.f32 %v470, %v474
    %v479 = vsub.f32 %v471, %v477
    %v480 = vmul.f32 %v478, 1.442695
    %v481 = vpow.pop %v480
    %v482 = vmul.f32 %v479, 1.442695
    %v483 = vpow.pop %v482
    %v484 = vsel %vm129, %v481, 0.0
    %485 = vadd.xlane.f32.xlu0 %v484
    %v486 = vpop.xlane.xlu0 %485
    %v487 = vsel %vm129, %v483, 0.0
    %488 = vadd.xlane.f32.xlu0 %v487
    %v489 = vpop.xlane.xlu0 %488
    %v490 = vmax.f32 %v486, 1e-20
    %v491 = vmax.f32 %v489, 1e-20
    %v492 = vrcp.pop %v490
    %v493 = vrcp.pop %v491
    %v495 = vsel %vm129, %v481, 0
    %v498 = vsel %vm129, %v483, 0
    %500 = vmatpush.msra.mxu0 0.0
    %501 = vmatpush.msra.mxu0 0.0
    %502 = vmatpush.msra.mxu0 0.0
    %503 = vmatpush.msra.mxu0 0.0
    %504 = vmatpush.msra.mxu0 0.0
    %505 = vmatpush.msra.mxu0 0.0
    %506 = vmatpush.msra.mxu0 0.0
    %507 = vmatpush.msra.mxu0 0.0
    %508 = vmatpush.msra.mxu0 0.0
    %509 = vmatpush.msra.mxu0 0.0
    %510 = vmatpush.msra.mxu0 0.0
    %511 = vmatpush.msra.mxu0 0.0
    %512 = vmatpush.msra.mxu0 0.0
    %513 = vmatpush.msra.mxu0 0.0
    %514 = vmatpush.msra.mxu0 %v400
    %515 = vmatpush.msra.mxu0 %v397
    %516 = vmatmul.f32.gmra.mxu0 %v495
    %v517 = vpop.f32.mrf.mxu0
    %v518 = vadd.f32 0.0, %v517
    %519 = vmatmul.f32.gmra.mxu0 %v498
    %v520 = vpop.f32.mrf.mxu0
    %v521 = vadd.f32 0.0, %v520
    %522 = vdwg.mxu0
    %v523 = vmul.f32 %v518, %v492
    %v524 = vmul.f32 %v521, %v493
    %s525 = scalar_lea.vmem %s6, 2
    %v526 = vld [vmem:[%s525] sm:$0x1]
    %v528 = vperm.slane %v526, 0
    %v530 = vadd.f32 %v523, %v528
    %v531 = vadd.f32 %v524, %v528
    %v532 = vmax.f32 %v530, 0.0
    %v533 = vmax.f32 %v531, 0.0
    %s534 = scalar_lea.vmem %s3, 24
    %v535 = vld [vmem:[%s534] sm:$0xff]
    %v537 = vsel %vm48, %v532, 0
    %v540 = vsel %vm48, %v533, 0
    %542 = vmatpush.msra.mxu0 0.0
    %543 = vmatpush.msra.mxu0 0.0
    %544 = vmatpush.msra.mxu0 0.0
    %545 = vmatpush.msra.mxu0 0.0
    %546 = vmatpush.msra.mxu0 0.0
    %547 = vmatpush.msra.mxu0 0.0
    %548 = vmatpush.msra.mxu0 0.0
    %549 = vmatpush.msra.mxu0 0.0
    %550 = vmatpush.msra.mxu0 0.0
    %551 = vmatpush.msra.mxu0 0.0
    %552 = vmatpush.msra.mxu0 0.0
    %553 = vmatpush.msra.mxu0 0.0
    %554 = vmatpush.msra.mxu0 0.0
    %555 = vmatpush.msra.mxu0 0.0
    %556 = vmatpush.msra.mxu0 0.0
    %557 = vmatpush.msra.mxu0 %v535
    %558 = vmatmul.f32.gmra.mxu0 %v537
    %v559 = vpop.f32.mrf.mxu0
    %v560 = vadd.f32 0.0, %v559
    %561 = vmatmul.f32.gmra.mxu0 %v540
    %v562 = vpop.f32.mrf.mxu0
    %v563 = vadd.f32 0.0, %v562
    %564 = vdwg.mxu0
    %s565 = scalar_lea.vmem %s4, 3
    %v566 = vld [vmem:[%s565] sm:$0x1]
    %v568 = vperm.slane %v566, 0
    %v570 = vmul.f32 %v560, %v568
    %v571 = vmul.f32 %v563, %v568
    %v572 = vsel %vm48, %v570, 0.0
    %573 = vadd.xlane.f32.xlu0 %v572
    %v574 = vpop.xlane.xlu0 %573
    %v575 = vsel %vm48, %v571, 0.0
    %576 = vadd.xlane.f32.xlu0 %v575
    %v577 = vpop.xlane.xlu0 %576
    %578 = vxpose.xlu0.b32.start [1/16] %v560, 128
    %579 = vxpose.xlu0.b32.cont [2/16] %v563, 128
    %580 = vxpose.xlu0.b32.cont [3/16] 0.0, 128
    %581 = vxpose.xlu0.b32.cont [4/16] 0.0, 128
    %582 = vxpose.xlu0.b32.cont [5/16] 0.0, 128
    %583 = vxpose.xlu0.b32.cont [6/16] 0.0, 128
    %584 = vxpose.xlu0.b32.cont [7/16] 0.0, 128
    %585 = vxpose.xlu0.b32.cont [8/16] 0.0, 128
    %586 = vxpose.xlu0.b32.cont [9/16] 0.0, 128
    %587 = vxpose.xlu0.b32.cont [10/16] 0.0, 128
    %588 = vxpose.xlu0.b32.cont [11/16] 0.0, 128
    %589 = vxpose.xlu0.b32.cont [12/16] 0.0, 128
    %590 = vxpose.xlu0.b32.cont [13/16] 0.0, 128
    %591 = vxpose.xlu0.b32.cont [14/16] 0.0, 128
    %592 = vxpose.xlu0.b32.cont [15/16] 0.0, 128
    %593 = vxpose.xlu0.b32.end [16/16] 0.0, 128
    %v594 = vpop.trf.xlu0
    %v595 = vpop.trf.xlu0
    %v596 = vpop.trf.xlu0
    %v597 = vpop.trf.xlu0
    %v598 = vpop.trf.xlu0
    %v599 = vpop.trf.xlu0
    %v600 = vpop.trf.xlu0
    %v601 = vpop.trf.xlu0
    %v602 = vpop.trf.xlu0
    %v603 = vpop.trf.xlu0
    %v604 = vpop.trf.xlu0
    %v605 = vpop.trf.xlu0
    %v606 = vpop.trf.xlu0
    %v607 = vpop.trf.xlu0
    %v608 = vpop.trf.xlu0
    %v609 = vpop.trf.xlu0
    %s610 = scalar_lea.vmem %s5, 24
    %v611 = vld [vmem:[%s610] sm:$0xff]
    %613 = vset.pattern.permute.xlu0 0
    %614 = vperm.xlu0 %613, %v611
    %v615 = vpop.permute.xlu0 %614
    %v617 = vmul.f32 %v594, %v615
    %v618 = vsel %vm129, %v617, 0.0
    %v619 = vrot.slane %v618, 4
    %v620 = vadd.f32 %v618, %v619
    %v621 = vrot.slane %v620, 2
    %v622 = vadd.f32 %v620, %v621
    %v623 = vrot.slane %v622, 1
    %v624 = vadd.f32 %v622, %v623
    %v625 = vadd.f32 %v574, %v624
    %v626 = vadd.f32 %v577, %v624
    %vm627 = vcmp.gt.f32.partialorder %v625, 0.0
    %vm628 = vcmp.gt.f32.partialorder %v626, 0.0
    %v629 = vmul.f32 %v625, 0.2
    %v630 = vmul.f32 %v626, 0.2
    %v631 = vsel %vm627, %v625, %v629
    %v632 = vsel %vm628, %v626, %v630
    %v633 = vadd.f32 %v631, %v43
    %v634 = vadd.f32 %v632, %v44
    %v635 = vsel %vm129, %v633, -inf
    %636 = vmax.xlane.f32.xlu0 %v635
    %v637 = vpop.xlane.xlu0 %636
    %v638 = vsel %vm129, %v634, -inf
    %639 = vmax.xlane.f32.xlu0 %v638
    %v640 = vpop.xlane.xlu0 %639
    %v641 = vsub.f32 %v633, %v637
    %v642 = vsub.f32 %v634, %v640
    %v643 = vmul.f32 %v641, 1.442695
    %v644 = vpow.pop %v643
    %v645 = vmul.f32 %v642, 1.442695
    %v646 = vpow.pop %v645
    %v647 = vsel %vm129, %v644, 0.0
    %648 = vadd.xlane.f32.xlu0 %v647
    %v649 = vpop.xlane.xlu0 %648
    %v650 = vsel %vm129, %v646, 0.0
    %651 = vadd.xlane.f32.xlu0 %v650
    %v652 = vpop.xlane.xlu0 %651
    %v653 = vmax.f32 %v649, 1e-20
    %v654 = vmax.f32 %v652, 1e-20
    %v655 = vrcp.pop %v653
    %v656 = vrcp.pop %v654
    %v658 = vsel %vm129, %v644, 0
    %v661 = vsel %vm129, %v646, 0
    %663 = vmatpush.msra.mxu0 0.0
    %664 = vmatpush.msra.mxu0 0.0
    %665 = vmatpush.msra.mxu0 0.0
    %666 = vmatpush.msra.mxu0 0.0
    %667 = vmatpush.msra.mxu0 0.0
    %668 = vmatpush.msra.mxu0 0.0
    %669 = vmatpush.msra.mxu0 0.0
    %670 = vmatpush.msra.mxu0 0.0
    %671 = vmatpush.msra.mxu0 0.0
    %672 = vmatpush.msra.mxu0 0.0
    %673 = vmatpush.msra.mxu0 0.0
    %674 = vmatpush.msra.mxu0 0.0
    %675 = vmatpush.msra.mxu0 0.0
    %676 = vmatpush.msra.mxu0 0.0
    %677 = vmatpush.msra.mxu0 %v563
    %678 = vmatpush.msra.mxu0 %v560
    %679 = vmatmul.f32.gmra.mxu0 %v658
    %v680 = vpop.f32.mrf.mxu0
    %v681 = vadd.f32 0.0, %v680
    %682 = vmatmul.f32.gmra.mxu0 %v661
    %v683 = vpop.f32.mrf.mxu0
    %v684 = vadd.f32 0.0, %v683
    %685 = vdwg.mxu0
    %v686 = vmul.f32 %v681, %v655
    %v687 = vmul.f32 %v684, %v656
    %s688 = scalar_lea.vmem %s6, 3
    %v689 = vld [vmem:[%s688] sm:$0x1]
    %v691 = vperm.slane %v689, 0
    %v693 = vadd.f32 %v686, %v691
    %v694 = vadd.f32 %v687, %v691
    %v695 = vmax.f32 %v693, 0.0
    %v696 = vmax.f32 %v694, 0.0
    %s697 = scalar_lea.vmem %s3, 32
    %v698 = vld [vmem:[%s697] sm:$0xff]
    %v700 = vsel %vm48, %v695, 0
    %v703 = vsel %vm48, %v696, 0
    %705 = vmatpush.msra.mxu0 0.0
    %706 = vmatpush.msra.mxu0 0.0
    %707 = vmatpush.msra.mxu0 0.0
    %708 = vmatpush.msra.mxu0 0.0
    %709 = vmatpush.msra.mxu0 0.0
    %710 = vmatpush.msra.mxu0 0.0
    %711 = vmatpush.msra.mxu0 0.0
    %712 = vmatpush.msra.mxu0 0.0
    %713 = vmatpush.msra.mxu0 0.0
    %714 = vmatpush.msra.mxu0 0.0
    %715 = vmatpush.msra.mxu0 0.0
    %716 = vmatpush.msra.mxu0 0.0
    %717 = vmatpush.msra.mxu0 0.0
    %718 = vmatpush.msra.mxu0 0.0
    %719 = vmatpush.msra.mxu0 0.0
    %720 = vmatpush.msra.mxu0 %v698
    %721 = vmatmul.f32.gmra.mxu0 %v700
    %v722 = vpop.f32.mrf.mxu0
    %v723 = vadd.f32 0.0, %v722
    %724 = vmatmul.f32.gmra.mxu0 %v703
    %v725 = vpop.f32.mrf.mxu0
    %v726 = vadd.f32 0.0, %v725
    %727 = vdwg.mxu0
    %s728 = scalar_lea.vmem %s4, 4
    %v729 = vld [vmem:[%s728] sm:$0x1]
    %v731 = vperm.slane %v729, 0
    %v733 = vmul.f32 %v723, %v731
    %v734 = vmul.f32 %v726, %v731
    %v735 = vsel %vm48, %v733, 0.0
    %736 = vadd.xlane.f32.xlu0 %v735
    %v737 = vpop.xlane.xlu0 %736
    %v738 = vsel %vm48, %v734, 0.0
    %739 = vadd.xlane.f32.xlu0 %v738
    %v740 = vpop.xlane.xlu0 %739
    %741 = vxpose.xlu0.b32.start [1/16] %v723, 128
    %742 = vxpose.xlu0.b32.cont [2/16] %v726, 128
    %743 = vxpose.xlu0.b32.cont [3/16] 0.0, 128
    %744 = vxpose.xlu0.b32.cont [4/16] 0.0, 128
    %745 = vxpose.xlu0.b32.cont [5/16] 0.0, 128
    %746 = vxpose.xlu0.b32.cont [6/16] 0.0, 128
    %747 = vxpose.xlu0.b32.cont [7/16] 0.0, 128
    %748 = vxpose.xlu0.b32.cont [8/16] 0.0, 128
    %749 = vxpose.xlu0.b32.cont [9/16] 0.0, 128
    %750 = vxpose.xlu0.b32.cont [10/16] 0.0, 128
    %751 = vxpose.xlu0.b32.cont [11/16] 0.0, 128
    %752 = vxpose.xlu0.b32.cont [12/16] 0.0, 128
    %753 = vxpose.xlu0.b32.cont [13/16] 0.0, 128
    %754 = vxpose.xlu0.b32.cont [14/16] 0.0, 128
    %755 = vxpose.xlu0.b32.cont [15/16] 0.0, 128
    %756 = vxpose.xlu0.b32.end [16/16] 0.0, 128
    %v757 = vpop.trf.xlu0
    %v758 = vpop.trf.xlu0
    %v759 = vpop.trf.xlu0
    %v760 = vpop.trf.xlu0
    %v761 = vpop.trf.xlu0
    %v762 = vpop.trf.xlu0
    %v763 = vpop.trf.xlu0
    %v764 = vpop.trf.xlu0
    %v765 = vpop.trf.xlu0
    %v766 = vpop.trf.xlu0
    %v767 = vpop.trf.xlu0
    %v768 = vpop.trf.xlu0
    %v769 = vpop.trf.xlu0
    %v770 = vpop.trf.xlu0
    %v771 = vpop.trf.xlu0
    %v772 = vpop.trf.xlu0
    %s773 = scalar_lea.vmem %s5, 32
    %v774 = vld [vmem:[%s773] sm:$0xff]
    %776 = vset.pattern.permute.xlu0 0
    %777 = vperm.xlu0 %776, %v774
    %v778 = vpop.permute.xlu0 %777
    %v780 = vmul.f32 %v757, %v778
    %v781 = vsel %vm129, %v780, 0.0
    %v782 = vrot.slane %v781, 4
    %v783 = vadd.f32 %v781, %v782
    %v784 = vrot.slane %v783, 2
    %v785 = vadd.f32 %v783, %v784
    %v786 = vrot.slane %v785, 1
    %v787 = vadd.f32 %v785, %v786
    %v788 = vadd.f32 %v737, %v787
    %v789 = vadd.f32 %v740, %v787
    %vm790 = vcmp.gt.f32.partialorder %v788, 0.0
    %vm791 = vcmp.gt.f32.partialorder %v789, 0.0
    %v792 = vmul.f32 %v788, 0.2
    %v793 = vmul.f32 %v789, 0.2
    %v794 = vsel %vm790, %v788, %v792
    %v795 = vsel %vm791, %v789, %v793
    %v796 = vadd.f32 %v794, %v43
    %v797 = vadd.f32 %v795, %v44
    %v798 = vsel %vm129, %v796, -inf
    %799 = vmax.xlane.f32.xlu0 %v798
    %v800 = vpop.xlane.xlu0 %799
    %v801 = vsel %vm129, %v797, -inf
    %802 = vmax.xlane.f32.xlu0 %v801
    %v803 = vpop.xlane.xlu0 %802
    %v804 = vsub.f32 %v796, %v800
    %v805 = vsub.f32 %v797, %v803
    %v806 = vmul.f32 %v804, 1.442695
    %v807 = vpow.pop %v806
    %v808 = vmul.f32 %v805, 1.442695
    %v809 = vpow.pop %v808
    %v810 = vsel %vm129, %v807, 0.0
    %811 = vadd.xlane.f32.xlu0 %v810
    %v812 = vpop.xlane.xlu0 %811
    %v813 = vsel %vm129, %v809, 0.0
    %814 = vadd.xlane.f32.xlu0 %v813
    %v815 = vpop.xlane.xlu0 %814
    %v816 = vmax.f32 %v812, 1e-20
    %v817 = vmax.f32 %v815, 1e-20
    %v818 = vrcp.pop %v816
    %v819 = vrcp.pop %v817
    %v821 = vsel %vm129, %v807, 0
    %v824 = vsel %vm129, %v809, 0
    %826 = vmatpush.msra.mxu0 0.0
    %827 = vmatpush.msra.mxu0 0.0
    %828 = vmatpush.msra.mxu0 0.0
    %829 = vmatpush.msra.mxu0 0.0
    %830 = vmatpush.msra.mxu0 0.0
    %831 = vmatpush.msra.mxu0 0.0
    %832 = vmatpush.msra.mxu0 0.0
    %833 = vmatpush.msra.mxu0 0.0
    %834 = vmatpush.msra.mxu0 0.0
    %835 = vmatpush.msra.mxu0 0.0
    %836 = vmatpush.msra.mxu0 0.0
    %837 = vmatpush.msra.mxu0 0.0
    %838 = vmatpush.msra.mxu0 0.0
    %839 = vmatpush.msra.mxu0 0.0
    %840 = vmatpush.msra.mxu0 %v726
    %841 = vmatpush.msra.mxu0 %v723
    %842 = vmatmul.f32.gmra.mxu0 %v821
    %v843 = vpop.f32.mrf.mxu0
    %v844 = vadd.f32 0.0, %v843
    %845 = vmatmul.f32.gmra.mxu0 %v824
    %v846 = vpop.f32.mrf.mxu0
    %v847 = vadd.f32 0.0, %v846
    %848 = vdwg.mxu0
    %v849 = vmul.f32 %v844, %v818
    %v850 = vmul.f32 %v847, %v819
    %s851 = scalar_lea.vmem %s6, 4
    %v852 = vld [vmem:[%s851] sm:$0x1]
    %v854 = vperm.slane %v852, 0
    %v856 = vadd.f32 %v849, %v854
    %v857 = vadd.f32 %v850, %v854
    %v858 = vmax.f32 %v856, 0.0
    %v859 = vmax.f32 %v857, 0.0
    %s860 = scalar_lea.vmem %s3, 40
    %v861 = vld [vmem:[%s860] sm:$0xff]
    %v863 = vsel %vm48, %v858, 0
    %v866 = vsel %vm48, %v859, 0
    %868 = vmatpush.msra.mxu0 0.0
    %869 = vmatpush.msra.mxu0 0.0
    %870 = vmatpush.msra.mxu0 0.0
    %871 = vmatpush.msra.mxu0 0.0
    %872 = vmatpush.msra.mxu0 0.0
    %873 = vmatpush.msra.mxu0 0.0
    %874 = vmatpush.msra.mxu0 0.0
    %875 = vmatpush.msra.mxu0 0.0
    %876 = vmatpush.msra.mxu0 0.0
    %877 = vmatpush.msra.mxu0 0.0
    %878 = vmatpush.msra.mxu0 0.0
    %879 = vmatpush.msra.mxu0 0.0
    %880 = vmatpush.msra.mxu0 0.0
    %881 = vmatpush.msra.mxu0 0.0
    %882 = vmatpush.msra.mxu0 0.0
    %883 = vmatpush.msra.mxu0 %v861
    %884 = vmatmul.f32.gmra.mxu0 %v863
    %v885 = vpop.f32.mrf.mxu0
    %v886 = vadd.f32 0.0, %v885
    %887 = vmatmul.f32.gmra.mxu0 %v866
    %v888 = vpop.f32.mrf.mxu0
    %v889 = vadd.f32 0.0, %v888
    %890 = vdwg.mxu0
    %s891 = scalar_lea.vmem %s4, 5
    %v892 = vld [vmem:[%s891] sm:$0x1]
    %v894 = vperm.slane %v892, 0
    %v896 = vmul.f32 %v886, %v894
    %v897 = vmul.f32 %v889, %v894
    %v898 = vsel %vm48, %v896, 0.0
    %899 = vadd.xlane.f32.xlu0 %v898
    %v900 = vpop.xlane.xlu0 %899
    %v901 = vsel %vm48, %v897, 0.0
    %902 = vadd.xlane.f32.xlu0 %v901
    %v903 = vpop.xlane.xlu0 %902
    %904 = vxpose.xlu0.b32.start [1/16] %v886, 128
    %905 = vxpose.xlu0.b32.cont [2/16] %v889, 128
    %906 = vxpose.xlu0.b32.cont [3/16] 0.0, 128
    %907 = vxpose.xlu0.b32.cont [4/16] 0.0, 128
    %908 = vxpose.xlu0.b32.cont [5/16] 0.0, 128
    %909 = vxpose.xlu0.b32.cont [6/16] 0.0, 128
    %910 = vxpose.xlu0.b32.cont [7/16] 0.0, 128
    %911 = vxpose.xlu0.b32.cont [8/16] 0.0, 128
    %912 = vxpose.xlu0.b32.cont [9/16] 0.0, 128
    %913 = vxpose.xlu0.b32.cont [10/16] 0.0, 128
    %914 = vxpose.xlu0.b32.cont [11/16] 0.0, 128
    %915 = vxpose.xlu0.b32.cont [12/16] 0.0, 128
    %916 = vxpose.xlu0.b32.cont [13/16] 0.0, 128
    %917 = vxpose.xlu0.b32.cont [14/16] 0.0, 128
    %918 = vxpose.xlu0.b32.cont [15/16] 0.0, 128
    %919 = vxpose.xlu0.b32.end [16/16] 0.0, 128
    %v920 = vpop.trf.xlu0
    %v921 = vpop.trf.xlu0
    %v922 = vpop.trf.xlu0
    %v923 = vpop.trf.xlu0
    %v924 = vpop.trf.xlu0
    %v925 = vpop.trf.xlu0
    %v926 = vpop.trf.xlu0
    %v927 = vpop.trf.xlu0
    %v928 = vpop.trf.xlu0
    %v929 = vpop.trf.xlu0
    %v930 = vpop.trf.xlu0
    %v931 = vpop.trf.xlu0
    %v932 = vpop.trf.xlu0
    %v933 = vpop.trf.xlu0
    %v934 = vpop.trf.xlu0
    %v935 = vpop.trf.xlu0
    %s936 = scalar_lea.vmem %s5, 40
    %v937 = vld [vmem:[%s936] sm:$0xff]
    %939 = vset.pattern.permute.xlu0 0
    %940 = vperm.xlu0 %939, %v937
    %v941 = vpop.permute.xlu0 %940
    %v943 = vmul.f32 %v920, %v941
    %v944 = vsel %vm129, %v943, 0.0
    %v945 = vrot.slane %v944, 4
    %v946 = vadd.f32 %v944, %v945
    %v947 = vrot.slane %v946, 2
    %v948 = vadd.f32 %v946, %v947
    %v949 = vrot.slane %v948, 1
    %v950 = vadd.f32 %v948, %v949
    %v951 = vadd.f32 %v900, %v950
    %v952 = vadd.f32 %v903, %v950
    %vm953 = vcmp.gt.f32.partialorder %v951, 0.0
    %vm954 = vcmp.gt.f32.partialorder %v952, 0.0
    %v955 = vmul.f32 %v951, 0.2
    %v956 = vmul.f32 %v952, 0.2
    %v957 = vsel %vm953, %v951, %v955
    %v958 = vsel %vm954, %v952, %v956
    %v959 = vadd.f32 %v957, %v43
    %v960 = vadd.f32 %v958, %v44
    %v961 = vsel %vm129, %v959, -inf
    %962 = vmax.xlane.f32.xlu0 %v961
    %v963 = vpop.xlane.xlu0 %962
    %v964 = vsel %vm129, %v960, -inf
    %965 = vmax.xlane.f32.xlu0 %v964
    %v966 = vpop.xlane.xlu0 %965
    %v967 = vsub.f32 %v959, %v963
    %v968 = vsub.f32 %v960, %v966
    %v969 = vmul.f32 %v967, 1.442695
    %v970 = vpow.pop %v969
    %v971 = vmul.f32 %v968, 1.442695
    %v972 = vpow.pop %v971
    %v973 = vsel %vm129, %v970, 0.0
    %974 = vadd.xlane.f32.xlu0 %v973
    %v975 = vpop.xlane.xlu0 %974
    %v976 = vsel %vm129, %v972, 0.0
    %977 = vadd.xlane.f32.xlu0 %v976
    %v978 = vpop.xlane.xlu0 %977
    %v979 = vmax.f32 %v975, 1e-20
    %v980 = vmax.f32 %v978, 1e-20
    %v981 = vrcp.pop %v979
    %v982 = vrcp.pop %v980
    %v984 = vsel %vm129, %v970, 0
    %v987 = vsel %vm129, %v972, 0
    %989 = vmatpush.msra.mxu0 0.0
    %990 = vmatpush.msra.mxu0 0.0
    %991 = vmatpush.msra.mxu0 0.0
    %992 = vmatpush.msra.mxu0 0.0
    %993 = vmatpush.msra.mxu0 0.0
    %994 = vmatpush.msra.mxu0 0.0
    %995 = vmatpush.msra.mxu0 0.0
    %996 = vmatpush.msra.mxu0 0.0
    %997 = vmatpush.msra.mxu0 0.0
    %998 = vmatpush.msra.mxu0 0.0
    %999 = vmatpush.msra.mxu0 0.0
    %1000 = vmatpush.msra.mxu0 0.0
    %1001 = vmatpush.msra.mxu0 0.0
    %1002 = vmatpush.msra.mxu0 0.0
    %1003 = vmatpush.msra.mxu0 %v889
    %1004 = vmatpush.msra.mxu0 %v886
    %1005 = vmatmul.f32.gmra.mxu0 %v984
    %v1006 = vpop.f32.mrf.mxu0
    %v1007 = vadd.f32 0.0, %v1006
    %1008 = vmatmul.f32.gmra.mxu0 %v987
    %v1009 = vpop.f32.mrf.mxu0
    %v1010 = vadd.f32 0.0, %v1009
    %1011 = vdwg.mxu0
    %v1012 = vmul.f32 %v1007, %v981
    %v1013 = vmul.f32 %v1010, %v982
    %s1014 = scalar_lea.vmem %s6, 5
    %v1015 = vld [vmem:[%s1014] sm:$0x1]
    %v1017 = vperm.slane %v1015, 0
    %v1019 = vadd.f32 %v1012, %v1017
    %v1020 = vadd.f32 %v1013, %v1017
    %v1021 = vmax.f32 %v1019, 0.0
    %v1022 = vmax.f32 %v1020, 0.0
    %v1023 = vld [vmem:[%s2] sm:$0x3]
    %v1025 = vsel %vm129, %v1023, 0
    %1027 = vmatpush.msra.mxu0 0.0
    %1028 = vmatpush.msra.mxu0 0.0
    %1029 = vmatpush.msra.mxu0 0.0
    %1030 = vmatpush.msra.mxu0 0.0
    %1031 = vmatpush.msra.mxu0 0.0
    %1032 = vmatpush.msra.mxu0 0.0
    %1033 = vmatpush.msra.mxu0 0.0
    %1034 = vmatpush.msra.mxu0 0.0
    %1035 = vmatpush.msra.mxu0 0.0
    %1036 = vmatpush.msra.mxu0 0.0
    %1037 = vmatpush.msra.mxu0 0.0
    %1038 = vmatpush.msra.mxu0 0.0
    %1039 = vmatpush.msra.mxu0 0.0
    %1040 = vmatpush.msra.mxu0 0.0
    %1041 = vmatpush.msra.mxu0 %v1022
    %1042 = vmatpush.msra.mxu0 %v1021
    %1043 = vmatmul.f32.gmra.mxu0 %v1025
    %v1044 = vpop.f32.mrf.mxu0
    %v1045 = vadd.f32 0.0, %v1044
    %1046 = vdwg.mxu0
    %v1047 = vld [vmem:[%s7] sm:$0xff]
    %v1048 = vld [vmem:[%s8] sm:$0x1]
    %v1050 = vperm.slane %v1048, 0
    %v1053 = vsel %vm48, %v1045, 0
    %1055 = vmatpush.msra.mxu0 0.0
    %1056 = vmatpush.msra.mxu0 0.0
    %1057 = vmatpush.msra.mxu0 0.0
    %1058 = vmatpush.msra.mxu0 0.0
    %1059 = vmatpush.msra.mxu0 0.0
    %1060 = vmatpush.msra.mxu0 0.0
    %1061 = vmatpush.msra.mxu0 0.0
    %1062 = vmatpush.msra.mxu0 0.0
    %1063 = vmatpush.msra.mxu0 0.0
    %1064 = vmatpush.msra.mxu0 0.0
    %1065 = vmatpush.msra.mxu0 0.0
    %1066 = vmatpush.msra.mxu0 0.0
    %1067 = vmatpush.msra.mxu0 0.0
    %1068 = vmatpush.msra.mxu0 0.0
    %1069 = vmatpush.msra.mxu0 0.0
    %1070 = vmatpush.msra.mxu0 %v1047
    %1071 = vmatmul.f32.gmra.mxu0 %v1053
    %v1072 = vpop.f32.mrf.mxu0
    %v1073 = vadd.f32 %v1050, %v1072
    %1074 = vdwg.mxu0
    %v1075 = vmax.f32 %v1073, 0.0
    %v1076 = vld [vmem:[%s9] sm:$0xff]
    %v1077 = vld [vmem:[%s10] sm:$0x1]
    %v1079 = vperm.slane %v1077, 0
    %v1082 = vsel %vm48, %v1075, 0
    %1084 = vmatpush.msra.mxu0 0.0
    %1085 = vmatpush.msra.mxu0 0.0
    %1086 = vmatpush.msra.mxu0 0.0
    %1087 = vmatpush.msra.mxu0 0.0
    %1088 = vmatpush.msra.mxu0 0.0
    %1089 = vmatpush.msra.mxu0 0.0
    %1090 = vmatpush.msra.mxu0 0.0
    %1091 = vmatpush.msra.mxu0 0.0
    %1092 = vmatpush.msra.mxu0 0.0
    %1093 = vmatpush.msra.mxu0 0.0
    %1094 = vmatpush.msra.mxu0 0.0
    %1095 = vmatpush.msra.mxu0 0.0
    %1096 = vmatpush.msra.mxu0 0.0
    %1097 = vmatpush.msra.mxu0 0.0
    %1098 = vmatpush.msra.mxu0 0.0
    %1099 = vmatpush.msra.mxu0 %v1076
    %1100 = vmatmul.f32.gmra.mxu0 %v1082
    %v1101 = vpop.f32.mrf.mxu0
    %v1102 = vadd.f32 %v1079, %v1101
    %1103 = vdwg.mxu0
    %vm1104 = vcmask 9216
    %1105 = vst.msk [vmem:[#allocation2] sm:$0x3] %vm1104, %v1102
    // Predicated region
    $region46: #{gatnet_mse_forward.1} parent=1 // pred_check
      _
    $region47: #{gatnet_mse_forward.1} parent=1 // pred_check_branch
      %1107 = sbr.rel (0) target = $region49
    $region48: #{gatnet_mse_forward.1} parent=1 // pred_region
      %1109 = vsyncadd [#allocation3], 0
      %s1111 = sshll.u32 [#allocation2], 4
      %s1112 = int_to_ptr.vmem [resolvable:$true] %s1111
      %s1113 = sshll.u32 %s11, 4
      %s1114 = int_to_ptr.hbm [resolvable:$true] %s1113
      %1116 = dma.vmem_to_hbm [thread:$0]  %s1112, 32, %s1114, [#allocation3]
    $region49: #{gatnet_mse_forward.1} parent=1 // pred_fallthru
      _
    // Predicated region
    $region50: #{gatnet_mse_forward.1} parent=1 // pred_check
      _
    $region51: #{gatnet_mse_forward.1} parent=1 // pred_check_branch
      %1118 = sbr.rel (0) target = $region53
    $region52: #{gatnet_mse_forward.1} parent=1 // pred_region
      %1120 = dma.done [#allocation3], 32
    $region53: #{gatnet_mse_forward.1} parent=1 // pred_fallthru
      _
    %1121 = vsyncpa [#allocation3], 1

</llo_original>
